<compile_context>
chip_gen: v7x
topology: tpu7x:2x2x1
jax: 0.10.0
libtpu: 0.0.40
codegen_flags: <defaults>
</compile_context>

<pallas_src>
import functools

import jax
import jax.numpy as jnp
from jax.experimental import pallas as pl
from jax.experimental.pallas import tpu as pltpu

# ----------------------------- configuration -----------------------------
PATCH = 2          # surrogate patch size (DINOv2 uses 14; shrunk for tiny demo)
VIS_DIM = 32       # cfg.vis_dim / cfg.ladder_dim
WORD_DIM = 32      # cfg.word_dim (== vis_dim here to keep glue minimal)
FFN_DIM = 64       # cfg.dim_ffn
VOCAB = 100        # surrogate text vocabulary
HEAD_PAD = 128     # gamma/beta/pw/pb fused-head width padded to one MXU lane group


def _vmem_limit_bytes():
    """Generation-aware scoped-VMEM limit: ~half physical capacity, capped at 64 MiB."""
    try:
        cap = int(getattr(pltpu.get_tpu_info(), "vmem_capacity_bytes", 128 * 1024 * 1024))
    except Exception:
        cap = 64 * 1024 * 1024
    return int(min(cap // 2, 64 * 1024 * 1024))


# ----------------------------- Pallas kernels -----------------------------
def _text_kernel(emb_ref, valid_ref, txt_w_ref, txt_b_ref,
                 kw_ref, kb_ref, vw_ref, vb_ref,
                 head_w_ref, head_b_ref,
                 k_ref, v_ref, heads_ref):
    """Whole-batch text encoding in one grid step.

    word_feat = emb @ txt_w + b                    (emb flattened to (B*L, Dw))
    K, V      = word_feat @ k_w + k_b, word_feat @ v_w + v_b   (separate lane-clean outputs)
    state     = (valid_blockdiag @ word_feat) / n_valid         (masked mean per batch)
    heads     = state @ [gamma_w | beta_w | pw_w | pb_w](pad 128) + bias
    """
    emb = emb_ref[...]                                   # (B*L, Dw) bf16
    wf = jnp.dot(emb, txt_w_ref[...],
                 preferred_element_type=jnp.float32) + txt_b_ref[...]
    wf16 = wf.astype(jnp.bfloat16)

    k = jnp.dot(wf16, kw_ref[...], preferred_element_type=jnp.float32) + kb_ref[...]
    v = jnp.dot(wf16, vw_ref[...], preferred_element_type=jnp.float32) + vb_ref[...]
    k_ref[...] = k.astype(k_ref.dtype)
    v_ref[...] = v.astype(v_ref.dtype)

    valid = valid_ref[...]                               # (B, B*L) f32, block-diagonal 0/1
    denom = jnp.maximum(jnp.sum(valid, axis=-1, keepdims=True), 1.0)     # (B, 1)
    state = jnp.dot(valid.astype(jnp.bfloat16), wf16,
                    preferred_element_type=jnp.float32) / denom          # (B, Dw)

    heads = jnp.dot(state.astype(jnp.bfloat16), head_w_ref[...],
                    preferred_element_type=jnp.float32) + head_b_ref[...]  # (B, HEAD_PAD)
    heads_ref[...] = heads[:, None, :].astype(heads_ref.dtype)             # (B, 1, HEAD_PAD)


def _vis_dec_kernel(patch_ref, heads_ref, k_ref, v_ref, mask_ref,
                    pw_ref, pb_ref, mw1_ref, mb1_ref, mw2_ref, mb2_ref,
                    nw_ref, nb_ref, qw_ref, qb_ref,
                    f1w_ref, f1b_ref, f2w_ref, f2b_ref,
                    pred_ref, *, C):
    """Fused visual backbone + Neck + FiLM + decoder + projector on one row tile.

    vis  = patch @ W_patch + b ;  vis += MLP(vis)               (DINOv2-block surrogate)
    fq   = vis @ W_neck + b    ;  fq = fq * gamma(state) + beta(state)     (FiLM)
    q    = fq @ W_q + b        ;  fq += softmax(q k^T + mask_bias) v       (cross-attn)
    fq  += FFN(fq)
    pred = pw(state) · fq + pb(state)           (per-sample dynamic 1x1 conv, lane-dense)
    fq stays entirely in VMEM; only pred (1, TN) is written back.
    """
    x = patch_ref[0]                                     # (TN, PD) bf16
    vis = jnp.dot(x, pw_ref[...], preferred_element_type=jnp.float32) + pb_ref[...]
    h = jax.nn.gelu(jnp.dot(vis.astype(jnp.bfloat16), mw1_ref[...],
                            preferred_element_type=jnp.float32) + mb1_ref[...])
    vis = vis + jnp.dot(h.astype(jnp.bfloat16), mw2_ref[...],
                        preferred_element_type=jnp.float32) + mb2_ref[...]
    fq = jnp.dot(vis.astype(jnp.bfloat16), nw_ref[...],
                 preferred_element_type=jnp.float32) + nb_ref[...]

    heads = heads_ref[0]                                 # (1, HEAD_PAD) f32
    gamma = heads[:, 0:C]
    beta = heads[:, C:2 * C]
    fq = fq * gamma + beta                               # FiLM (f32 elementwise)

    # Decoder: single-head masked cross-attention (1/sqrt(C) already folded into q_w/q_b).
    k = k_ref[...]                                       # (L, C) bf16
    v = v_ref[...]                                       # (L, C) bf16
    q = jnp.dot(fq.astype(jnp.bfloat16), qw_ref[...],
                preferred_element_type=jnp.float32) + qb_ref[...]
    s = jax.lax.dot_general(q.astype(jnp.bfloat16), k,
                            (((1,), (1,)), ((), ())),       # contract on C, no k.T
                            preferred_element_type=jnp.float32)
    s = s + mask_ref[0]                                  # (TN, L) + (1, L) pad bias
    s = s - jnp.max(s, axis=-1, keepdims=True)
    p = jnp.exp(s)
    p = p * pl.reciprocal(jnp.sum(p, axis=-1, keepdims=True), approx=True)
    fq = fq + jnp.dot(p.astype(jnp.bfloat16), v, preferred_element_type=jnp.float32)

    # Decoder FFN (residual folded; eval => dropout is a no-op).
    h = jnp.maximum(jnp.dot(fq.astype(jnp.bfloat16), f1w_ref[...],
                            preferred_element_type=jnp.float32) + f1b_ref[...], 0.0)
    fq = fq + jnp.dot(h.astype(jnp.bfloat16), f2w_ref[...],
                      preferred_element_type=jnp.float32) + f2b_ref[...]

    # Projector: dynamic per-sample 1x1 conv, emitted lane-dense as a (1, TN) row.
    pw = heads[:, 2 * C:3 * C]                           # (1, C)
    pb = heads[:, 3 * C:3 * C + 1]                       # (1, 1)
    pred = jax.lax.dot_general(pw.astype(jnp.bfloat16), fq.astype(jnp.bfloat16),
                               (((1,), (1,)), ((), ())),
                               preferred_element_type=jnp.float32) + pb      # (1, TN)
    pred_ref[0] = pred.astype(pred_ref.dtype)


# ----------------------------- parameters -----------------------------
def init_params(key):
    def lin(k, cin, cout, wdtype=jnp.bfloat16):
        w = 0.02 * jax.random.normal(k, (cin, cout), jnp.float32)
        b = jnp.zeros((1, cout), jnp.float32)
        return w.astype(wdtype), b

    ks = jax.random.split(key, 16)
    p = {}
    p["tok_emb"] = 0.02 * jax.random.normal(ks[0], (VOCAB, WORD_DIM), jnp.float32)
    p["txt_w"], p["txt_b"] = lin(ks[1], WORD_DIM, WORD_DIM)              # txt_backbone surrogate
    p["patch_w"], p["patch_b"] = lin(ks[2], 3 * PATCH * PATCH, VIS_DIM)  # dinov2 patch embed
    p["vmlp_w1"], p["vmlp_b1"] = lin(ks[3], VIS_DIM, FFN_DIM)            # dinov2 block MLP
    p["vmlp_w2"], p["vmlp_b2"] = lin(ks[4], FFN_DIM, VIS_DIM)
    p["neck_w"], p["neck_b"] = lin(ks[5], VIS_DIM, VIS_DIM)              # Neck projection
    gamma_w, gamma_b = lin(ks[6], WORD_DIM, VIS_DIM, jnp.float32)        # Neck text conditioning
    beta_w, beta_b = lin(ks[7], WORD_DIM, VIS_DIM, jnp.float32)
    q_w, q_b = lin(ks[8], VIS_DIM, VIS_DIM, jnp.float32)                 # Decoder cross-attn Q
    p["k_w"], p["k_b"] = lin(ks[9], WORD_DIM, VIS_DIM)                   # Decoder cross-attn K
    p["v_w"], p["v_b"] = lin(ks[10], WORD_DIM, VIS_DIM)                  # Decoder cross-attn V
    p["ffn_w1"], p["ffn_b1"] = lin(ks[11], VIS_DIM, FFN_DIM)             # Decoder FFN
    p["ffn_w2"], p["ffn_b2"] = lin(ks[12], FFN_DIM, VIS_DIM)
    pw_w, pw_b = lin(ks[13], WORD_DIM, VIS_DIM, jnp.float32)             # Projector dynamic weights
    pb_w, pb_b = lin(ks[14], WORD_DIM, 1, jnp.float32)                   # Projector dynamic bias

    # Fold 1/sqrt(C) attention scale into the query projection (zero runtime cost).
    scale = 1.0 / float(VIS_DIM) ** 0.5
    p["q_w"] = (q_w * scale).astype(jnp.bfloat16)
    p["q_b"] = q_b * scale

    # Fused gamma/beta/pw/pb "state head": one wide MXU call, zero-padded to 128 lanes.
    head_w = jnp.concatenate([gamma_w, beta_w, pw_w, pb_w], axis=1)      # (Dw, 3C+1)
    head_b = jnp.concatenate([gamma_b, beta_b, pw_b, pb_b], axis=1)      # (1, 3C+1)
    pad = HEAD_PAD - head_w.shape[1]
    assert pad >= 0
    p["head_w"] = jnp.pad(head_w, ((0, 0), (0, pad))).astype(jnp.bfloat16)   # (Dw, 128)
    p["head_b"] = jnp.pad(head_b, ((0, 0), (0, pad)))                        # (1, 128) f32
    return p


# ----------------------------- forward -----------------------------
def caris_forward(params, img, word):
    """
    img : (B, 3, H, W) float32 (NCHW, as in the PyTorch reference)
    word: (B, L) int32 token ids, 0 == padding
    returns pred: (B, 1, H//PATCH, W//PATCH) logits (eval path of CARIS.forward)
    """
    B, _, H, W = img.shape
    L = word.shape[1]
    Hp, Wp = H // PATCH, W // PATCH
    N = Hp * Wp
    C = VIS_DIM
    F = FFN_DIM
    Dw = WORD_DIM
    PD = 3 * PATCH * PATCH
    vmem_limit = _vmem_limit_bytes()

    # pad_mask = zeros_like(word).masked_fill_(word == 0, 1).bool()
    pad_mask = (word == 0)
    valid = (~pad_mask).astype(jnp.float32)                                  # (B, L)
    # Block-diagonal selector: row b picks batch-b tokens out of the flat (B*L, Dw) tensor,
    # so the masked-mean is a single (B, B*L) x (B*L, Dw) matmul inside the text kernel.
    valid_mat = (jnp.eye(B, dtype=jnp.float32)[:, :, None] * valid[None, :, :]).reshape(B, B * L)
    mask_bias = jnp.where(pad_mask, -1e9, 0.0).astype(jnp.float32).reshape(B, 1, L)

    # ---- text backbone surrogate (CLIP): token embedding + fused linear heads ----
    # TODO(synk): pretrained CLIP transformer (torch.jit.load) replaced by a
    # deterministic embedding+linear surrogate; no checkpoint loading.
    word_emb = params["tok_emb"][word].reshape(B * L, Dw).astype(jnp.bfloat16)  # glue gather

    k_txt, v_txt, heads = pl.pallas_call(
        _text_kernel,
        out_shape=(jax.ShapeDtypeStruct((B * L, C), jnp.bfloat16),
                   jax.ShapeDtypeStruct((B * L, C), jnp.bfloat16),
                   jax.ShapeDtypeStruct((B, 1, HEAD_PAD), jnp.float32)),
        grid=(1,),
        in_specs=[
            pl.BlockSpec((B * L, Dw), lambda i: (0, 0)),
            pl.BlockSpec((B, B * L), lambda i: (0, 0)),
            pl.BlockSpec((Dw, Dw), lambda i: (0, 0)),
            pl.BlockSpec((1, Dw), lambda i: (0, 0)),
            pl.BlockSpec((Dw, C), lambda i: (0, 0)),
            pl.BlockSpec((1, C), lambda i: (0, 0)),
            pl.BlockSpec((Dw, C), lambda i: (0, 0)),
            pl.BlockSpec((1, C), lambda i: (0, 0)),
            pl.BlockSpec((Dw, HEAD_PAD), lambda i: (0, 0)),
            pl.BlockSpec((1, HEAD_PAD), lambda i: (0, 0)),
        ],
        out_specs=(pl.BlockSpec((B * L, C), lambda i: (0, 0)),
                   pl.BlockSpec((B * L, C), lambda i: (0, 0)),
                   pl.BlockSpec((B, 1, HEAD_PAD), lambda i: (0, 0, 0))),
        compiler_params=pltpu.CompilerParams(
            dimension_semantics=("arbitrary",),
            vmem_limit_bytes=vmem_limit),
    )(word_emb, valid_mat, params["txt_w"], params["txt_b"],
      params["k_w"], params["k_b"], params["v_w"], params["v_b"],
      params["head_w"], params["head_b"])

    # ---- visual backbone + Neck + FiLM + decoder + projector, all fused ----
    # TODO(synk): patch extraction (NCHW -> (B, N, 3*P*P)) stays as a wrapper-side
    # XLA transpose (in-kernel relayout of NCHW tiles is not worth the risk here);
    # it is emitted in bf16 to halve its HBM traffic.
    patches = img.reshape(B, 3, Hp, PATCH, Wp, PATCH)
    patches = patches.transpose(0, 2, 4, 1, 3, 5).reshape(B, N, PD).astype(jnp.bfloat16)

    TN = N if N <= 1024 else 1024            # row tile; big to amortize per-step overhead
    n_tiles = pl.cdiv(N, TN)

    # TODO(synk): reference decoder is multi-head / multi-layer with dropout and the
    # Projector uses a 3x3 dynamic conv; here one single-head layer + dynamic 1x1 conv,
    # dropout is a no-op in eval.
    pred = pl.pallas_call(
        functools.partial(_vis_dec_kernel, C=C),
        out_shape=jax.ShapeDtypeStruct((B, 1, N), jnp.float32),
        grid=(B, n_tiles),
        in_specs=[
            pl.BlockSpec((1, TN, PD), lambda b, n: (b, n, 0)),
            pl.BlockSpec((1, 1, HEAD_PAD), lambda b, n: (b, 0, 0)),
            pl.BlockSpec((L, C), lambda b, n: (b, 0)),
            pl.BlockSpec((L, C), lambda b, n: (b, 0)),
            pl.BlockSpec((1, 1, L), lambda b, n: (b, 0, 0)),
            pl.BlockSpec((PD, C), lambda b, n: (0, 0)),
            pl.BlockSpec((1, C), lambda b, n: (0, 0)),
            pl.BlockSpec((C, F), lambda b, n: (0, 0)),
            pl.BlockSpec((1, F), lambda b, n: (0, 0)),
            pl.BlockSpec((F, C), lambda b, n: (0, 0)),
            pl.BlockSpec((1, C), lambda b, n: (0, 0)),
            pl.BlockSpec((C, C), lambda b, n: (0, 0)),
            pl.BlockSpec((1, C), lambda b, n: (0, 0)),
            pl.BlockSpec((C, C), lambda b, n: (0, 0)),
            pl.BlockSpec((1, C), lambda b, n: (0, 0)),
            pl.BlockSpec((C, F), lambda b, n: (0, 0)),
            pl.BlockSpec((1, F), lambda b, n: (0, 0)),
            pl.BlockSpec((F, C), lambda b, n: (0, 0)),
            pl.BlockSpec((1, C), lambda b, n: (0, 0)),
        ],
        out_specs=pl.BlockSpec((1, 1, TN), lambda b, n: (b, 0, n)),
        compiler_params=pltpu.CompilerParams(
            dimension_semantics=("parallel", "parallel"),   # batch axis keeps both v7x TCs busy
            vmem_limit_bytes=vmem_limit),
    )(patches, heads, k_txt, v_txt, mask_bias,
      params["patch_w"], params["patch_b"],
      params["vmlp_w1"], params["vmlp_b1"], params["vmlp_w2"], params["vmlp_b2"],
      params["neck_w"], params["neck_b"],
      params["q_w"], params["q_b"],
      params["ffn_w1"], params["ffn_b1"], params["ffn_w2"], params["ffn_b2"])

    # Lane-dense (B, 1, N) -> NCHW (B, 1, Hp, Wp): pure reshape, no transpose needed.
    pred = pred.reshape(B, 1, Hp, Wp)

    # eval path of CARIS.forward: return pred.detach()
    # TODO(synk): training branch (F.interpolate of mask + BCE-with-logits loss) not implemented.
    return pred


# ----------------------------- main -----------------------------
if __name__ == "__main__":
    key = jax.random.PRNGKey(0)
    pkey, ikey = jax.random.split(key)

    params = init_params(pkey)

    B, H, W, L = 2, 16, 16, 8
    img = jax.random.normal(ikey, (B, 3, H, W), jnp.float32)
    word = jnp.array([[5, 3, 7, 2, 0, 0, 0, 0],
                      [4, 9, 1, 6, 8, 2, 0, 0]], dtype=jnp.int32)

    fwd = jax.jit(caris_forward)
    pred = jax.block_until_ready(fwd(params, img, word))
    assert pred.shape == (B, 1, H // PATCH, W // PATCH)
    assert bool(jnp.all(jnp.isfinite(pred)))
    print("KERNEL_OK")
</pallas_src>

<mosaic_0001>
module attributes {stable_mosaic.version = 11 : i64} {
  func.func @_vis_dec_kernel(%arg0: i32, %arg1: i32, %arg2: memref<1x64x12xbf16, #tpu.memory_space<vmem>>, %arg3: memref<1x1x128xf32, #tpu.memory_space<vmem>>, %arg4: memref<8x32xbf16, #tpu.memory_space<vmem>>, %arg5: memref<8x32xbf16, #tpu.memory_space<vmem>>, %arg6: memref<1x1x8xf32, #tpu.memory_space<vmem>>, %arg7: memref<12x32xbf16, #tpu.memory_space<vmem>>, %arg8: memref<1x32xf32, #tpu.memory_space<vmem>>, %arg9: memref<32x64xbf16, #tpu.memory_space<vmem>>, %arg10: memref<1x64xf32, #tpu.memory_space<vmem>>, %arg11: memref<64x32xbf16, #tpu.memory_space<vmem>>, %arg12: memref<1x32xf32, #tpu.memory_space<vmem>>, %arg13: memref<32x32xbf16, #tpu.memory_space<vmem>>, %arg14: memref<1x32xf32, #tpu.memory_space<vmem>>, %arg15: memref<32x32xbf16, #tpu.memory_space<vmem>>, %arg16: memref<1x32xf32, #tpu.memory_space<vmem>>, %arg17: memref<32x64xbf16, #tpu.memory_space<vmem>>, %arg18: memref<1x64xf32, #tpu.memory_space<vmem>>, %arg19: memref<64x32xbf16, #tpu.memory_space<vmem>>, %arg20: memref<1x32xf32, #tpu.memory_space<vmem>>, %arg21: memref<1x1x64xf32, #tpu.memory_space<vmem>>) attributes {dimension_semantics = [#tpu.dimension_semantics<parallel>, #tpu.dimension_semantics<parallel>], iteration_bounds = array<i64: 2, 1>, scalar_prefetch = 0 : i64, scratch_operands = 0 : i64, tpu.core_type = #tpu.core_type<tc>, window_params = [{transform_indices = @transform_0, window_bounds = array<i64: 1, 64, 12>}, {transform_indices = @transform_1, window_bounds = array<i64: 1, 1, 128>}, {transform_indices = @transform_2, window_bounds = array<i64: 8, 32>}, {transform_indices = @transform_3, window_bounds = array<i64: 8, 32>}, {transform_indices = @transform_4, window_bounds = array<i64: 1, 1, 8>}, {pipeline_mode = #tpu.pipeline_mode<synchronous>, transform_indices = @transform_5, window_bounds = array<i64: 12, 32>}, {pipeline_mode = #tpu.pipeline_mode<synchronous>, transform_indices = @transform_6, window_bounds = array<i64: 1, 32>}, {pipeline_mode = #tpu.pipeline_mode<synchronous>, transform_indices = @transform_7, window_bounds = array<i64: 32, 64>}, {pipeline_mode = #tpu.pipeline_mode<synchronous>, transform_indices = @transform_8, window_bounds = array<i64: 1, 64>}, {pipeline_mode = #tpu.pipeline_mode<synchronous>, transform_indices = @transform_9, window_bounds = array<i64: 64, 32>}, {pipeline_mode = #tpu.pipeline_mode<synchronous>, transform_indices = @transform_10, window_bounds = array<i64: 1, 32>}, {pipeline_mode = #tpu.pipeline_mode<synchronous>, transform_indices = @transform_11, window_bounds = array<i64: 32, 32>}, {pipeline_mode = #tpu.pipeline_mode<synchronous>, transform_indices = @transform_12, window_bounds = array<i64: 1, 32>}, {pipeline_mode = #tpu.pipeline_mode<synchronous>, transform_indices = @transform_13, window_bounds = array<i64: 32, 32>}, {pipeline_mode = #tpu.pipeline_mode<synchronous>, transform_indices = @transform_14, window_bounds = array<i64: 1, 32>}, {pipeline_mode = #tpu.pipeline_mode<synchronous>, transform_indices = @transform_15, window_bounds = array<i64: 32, 64>}, {pipeline_mode = #tpu.pipeline_mode<synchronous>, transform_indices = @transform_16, window_bounds = array<i64: 1, 64>}, {pipeline_mode = #tpu.pipeline_mode<synchronous>, transform_indices = @transform_17, window_bounds = array<i64: 64, 32>}, {pipeline_mode = #tpu.pipeline_mode<synchronous>, transform_indices = @transform_18, window_bounds = array<i64: 1, 32>}, {transform_indices = @transform_19, window_bounds = array<i64: 1, 1, 64>}]} {
    %c0 = arith.constant 0 : index
    %c0_0 = arith.constant 0 : index
    %c0_1 = arith.constant 0 : index
    %0 = vector.load %arg2[%c0, %c0_0, %c0_1] : memref<1x64x12xbf16, #tpu.memory_space<vmem>>, vector<1x64x12xbf16>
    %1 = vector.shape_cast %0 : vector<1x64x12xbf16> to vector<64x12xbf16>
    %c0_2 = arith.constant 0 : index
    %c0_3 = arith.constant 0 : index
    %2 = vector.load %arg7[%c0_2, %c0_3] : memref<12x32xbf16, #tpu.memory_space<vmem>>, vector<12x32xbf16>
    %cst = arith.constant dense<0.000000e+00> : vector<64x32xf32>
    %3 = tpu.matmul %1, %2, %cst {dimension_numbers = #tpu.dot_dimension_numbers<[1], [0], [0], [1], [0, 0, 1, 1], [], []>} : vector<64x12xbf16>, vector<12x32xbf16>, vector<64x32xf32> -> vector<64x32xf32>
    %c0_4 = arith.constant 0 : index
    %c0_5 = arith.constant 0 : index
    %4 = vector.load %arg8[%c0_4, %c0_5] : memref<1x32xf32, #tpu.memory_space<vmem>>, vector<1x32xf32>
    %5 = vector.broadcast %4 : vector<1x32xf32> to vector<64x32xf32>
    %6 = arith.addf %3, %5 : vector<64x32xf32>
    %7 = arith.truncf %6 : vector<64x32xf32> to vector<64x32xbf16>
    %c0_6 = arith.constant 0 : index
    %c0_7 = arith.constant 0 : index
    %8 = vector.load %arg9[%c0_6, %c0_7] : memref<32x64xbf16, #tpu.memory_space<vmem>>, vector<32x64xbf16>
    %cst_8 = arith.constant dense<0.000000e+00> : vector<64x64xf32>
    %9 = tpu.matmul %7, %8, %cst_8 {dimension_numbers = #tpu.dot_dimension_numbers<[1], [0], [0], [1], [0, 0, 1, 1], [], []>} : vector<64x32xbf16>, vector<32x64xbf16>, vector<64x64xf32> -> vector<64x64xf32>
    %c0_9 = arith.constant 0 : index
    %c0_10 = arith.constant 0 : index
    %10 = vector.load %arg10[%c0_9, %c0_10] : memref<1x64xf32, #tpu.memory_space<vmem>>, vector<1x64xf32>
    %11 = vector.broadcast %10 : vector<1x64xf32> to vector<64x64xf32>
    %12 = arith.addf %9, %11 : vector<64x64xf32>
    %13 = arith.mulf %12, %12 : vector<64x64xf32>
    %14 = arith.mulf %12, %13 : vector<64x64xf32>
    %cst_11 = arith.constant 4.471500e-02 : f32
    %15 = vector.broadcast %cst_11 : f32 to vector<64x64xf32>
    %16 = arith.mulf %15, %14 : vector<64x64xf32>
    %17 = arith.addf %12, %16 : vector<64x64xf32>
    %cst_12 = arith.constant 0.797884583 : f32
    %18 = vector.broadcast %cst_12 : f32 to vector<64x64xf32>
    %19 = arith.mulf %18, %17 : vector<64x64xf32>
    %20 = math.tanh %19 : vector<64x64xf32>
    %cst_13 = arith.constant 1.000000e+00 : f32
    %21 = vector.broadcast %cst_13 : f32 to vector<64x64xf32>
    %22 = arith.addf %21, %20 : vector<64x64xf32>
    %cst_14 = arith.constant 5.000000e-01 : f32
    %23 = vector.broadcast %cst_14 : f32 to vector<64x64xf32>
    %24 = arith.mulf %23, %22 : vector<64x64xf32>
    %25 = arith.mulf %12, %24 : vector<64x64xf32>
    %26 = arith.truncf %25 : vector<64x64xf32> to vector<64x64xbf16>
    %c0_15 = arith.constant 0 : index
    %c0_16 = arith.constant 0 : index
    %27 = vector.load %arg11[%c0_15, %c0_16] : memref<64x32xbf16, #tpu.memory_space<vmem>>, vector<64x32xbf16>
    %cst_17 = arith.constant dense<0.000000e+00> : vector<64x32xf32>
    %28 = tpu.matmul %26, %27, %cst_17 {dimension_numbers = #tpu.dot_dimension_numbers<[1], [0], [0], [1], [0, 0, 1, 1], [], []>} : vector<64x64xbf16>, vector<64x32xbf16>, vector<64x32xf32> -> vector<64x32xf32>
    %29 = arith.addf %6, %28 : vector<64x32xf32>
    %c0_18 = arith.constant 0 : index
    %c0_19 = arith.constant 0 : index
    %30 = vector.load %arg12[%c0_18, %c0_19] : memref<1x32xf32, #tpu.memory_space<vmem>>, vector<1x32xf32>
    %31 = vector.broadcast %30 : vector<1x32xf32> to vector<64x32xf32>
    %32 = arith.addf %29, %31 : vector<64x32xf32>
    %33 = arith.truncf %32 : vector<64x32xf32> to vector<64x32xbf16>
    %c0_20 = arith.constant 0 : index
    %c0_21 = arith.constant 0 : index
    %34 = vector.load %arg13[%c0_20, %c0_21] : memref<32x32xbf16, #tpu.memory_space<vmem>>, vector<32x32xbf16>
    %cst_22 = arith.constant dense<0.000000e+00> : vector<64x32xf32>
    %35 = tpu.matmul %33, %34, %cst_22 {dimension_numbers = #tpu.dot_dimension_numbers<[1], [0], [0], [1], [0, 0, 1, 1], [], []>} : vector<64x32xbf16>, vector<32x32xbf16>, vector<64x32xf32> -> vector<64x32xf32>
    %c0_23 = arith.constant 0 : index
    %c0_24 = arith.constant 0 : index
    %36 = vector.load %arg14[%c0_23, %c0_24] : memref<1x32xf32, #tpu.memory_space<vmem>>, vector<1x32xf32>
    %37 = vector.broadcast %36 : vector<1x32xf32> to vector<64x32xf32>
    %38 = arith.addf %35, %37 : vector<64x32xf32>
    %c0_25 = arith.constant 0 : index
    %c0_26 = arith.constant 0 : index
    %c0_27 = arith.constant 0 : index
    %39 = vector.load %arg3[%c0_25, %c0_26, %c0_27] : memref<1x1x128xf32, #tpu.memory_space<vmem>>, vector<1x1x128xf32>
    %40 = vector.shape_cast %39 : vector<1x1x128xf32> to vector<1x128xf32>
    %41 = vector.extract_strided_slice %40 {offsets = [0, 0], sizes = [1, 32], strides = [1, 1]} : vector<1x128xf32> to vector<1x32xf32>
    %42 = vector.extract_strided_slice %40 {offsets = [0, 32], sizes = [1, 32], strides = [1, 1]} : vector<1x128xf32> to vector<1x32xf32>
    %43 = vector.broadcast %41 : vector<1x32xf32> to vector<64x32xf32>
    %44 = arith.mulf %38, %43 : vector<64x32xf32>
    %45 = vector.broadcast %42 : vector<1x32xf32> to vector<64x32xf32>
    %46 = arith.addf %44, %45 : vector<64x32xf32>
    %c0_28 = arith.constant 0 : index
    %c0_29 = arith.constant 0 : index
    %47 = vector.load %arg4[%c0_28, %c0_29] : memref<8x32xbf16, #tpu.memory_space<vmem>>, vector<8x32xbf16>
    %c0_30 = arith.constant 0 : index
    %c0_31 = arith.constant 0 : index
    %48 = vector.load %arg5[%c0_30, %c0_31] : memref<8x32xbf16, #tpu.memory_space<vmem>>, vector<8x32xbf16>
    %49 = arith.truncf %46 : vector<64x32xf32> to vector<64x32xbf16>
    %c0_32 = arith.constant 0 : index
    %c0_33 = arith.constant 0 : index
    %50 = vector.load %arg15[%c0_32, %c0_33] : memref<32x32xbf16, #tpu.memory_space<vmem>>, vector<32x32xbf16>
    %cst_34 = arith.constant dense<0.000000e+00> : vector<64x32xf32>
    %51 = tpu.matmul %49, %50, %cst_34 {dimension_numbers = #tpu.dot_dimension_numbers<[1], [0], [0], [1], [0, 0, 1, 1], [], []>} : vector<64x32xbf16>, vector<32x32xbf16>, vector<64x32xf32> -> vector<64x32xf32>
    %c0_35 = arith.constant 0 : index
    %c0_36 = arith.constant 0 : index
    %52 = vector.load %arg16[%c0_35, %c0_36] : memref<1x32xf32, #tpu.memory_space<vmem>>, vector<1x32xf32>
    %53 = vector.broadcast %52 : vector<1x32xf32> to vector<64x32xf32>
    %54 = arith.addf %51, %53 : vector<64x32xf32>
    %55 = arith.truncf %54 : vector<64x32xf32> to vector<64x32xbf16>
    %cst_37 = arith.constant dense<0.000000e+00> : vector<64x8xf32>
    %56 = tpu.matmul %55, %47, %cst_37 {dimension_numbers = #tpu.dot_dimension_numbers<[1], [1], [0], [0], [0, 0, 1, 0], [], []>} : vector<64x32xbf16>, vector<8x32xbf16>, vector<64x8xf32> -> vector<64x8xf32>
    %c0_38 = arith.constant 0 : index
    %c0_39 = arith.constant 0 : index
    %c0_40 = arith.constant 0 : index
    %57 = vector.load %arg6[%c0_38, %c0_39, %c0_40] : memref<1x1x8xf32, #tpu.memory_space<vmem>>, vector<1x1x8xf32>
    %58 = vector.shape_cast %57 : vector<1x1x8xf32> to vector<1x8xf32>
    %59 = vector.broadcast %58 : vector<1x8xf32> to vector<64x8xf32>
    %60 = arith.addf %56, %59 : vector<64x8xf32>
    %cst_41 = arith.constant dense<0xFF800000> : vector<64xf32>
    %61 = vector.multi_reduction <maximumf>, %60, %cst_41 [1] : vector<64x8xf32> to vector<64xf32>
    %62 = vector.shape_cast %61 : vector<64xf32> to vector<64x1xf32>
    %63 = vector.broadcast %62 : vector<64x1xf32> to vector<64x8xf32>
    %64 = arith.subf %60, %63 : vector<64x8xf32>
    %65 = math.exp %64 : vector<64x8xf32>
    %cst_42 = arith.constant dense<0.000000e+00> : vector<64xf32>
    %66 = vector.multi_reduction <add>, %65, %cst_42 [1] : vector<64x8xf32> to vector<64xf32>
    %67 = vector.shape_cast %66 : vector<64xf32> to vector<64x1xf32>
    %68 = tpu.reciprocal %67 {approx = true} : vector<64x1xf32> -> vector<64x1xf32>
    %69 = vector.broadcast %68 : vector<64x1xf32> to vector<64x8xf32>
    %70 = arith.mulf %65, %69 : vector<64x8xf32>
    %71 = arith.truncf %70 : vector<64x8xf32> to vector<64x8xbf16>
    %cst_43 = arith.constant dense<0.000000e+00> : vector<64x32xf32>
    %72 = tpu.matmul %71, %48, %cst_43 {dimension_numbers = #tpu.dot_dimension_numbers<[1], [0], [0], [1], [0, 0, 1, 1], [], []>} : vector<64x8xbf16>, vector<8x32xbf16>, vector<64x32xf32> -> vector<64x32xf32>
    %73 = arith.addf %46, %72 : vector<64x32xf32>
    %74 = arith.truncf %73 : vector<64x32xf32> to vector<64x32xbf16>
    %c0_44 = arith.constant 0 : index
    %c0_45 = arith.constant 0 : index
    %75 = vector.load %arg17[%c0_44, %c0_45] : memref<32x64xbf16, #tpu.memory_space<vmem>>, vector<32x64xbf16>
    %cst_46 = arith.constant dense<0.000000e+00> : vector<64x64xf32>
    %76 = tpu.matmul %74, %75, %cst_46 {dimension_numbers = #tpu.dot_dimension_numbers<[1], [0], [0], [1], [0, 0, 1, 1], [], []>} : vector<64x32xbf16>, vector<32x64xbf16>, vector<64x64xf32> -> vector<64x64xf32>
    %c0_47 = arith.constant 0 : index
    %c0_48 = arith.constant 0 : index
    %77 = vector.load %arg18[%c0_47, %c0_48] : memref<1x64xf32, #tpu.memory_space<vmem>>, vector<1x64xf32>
    %78 = vector.broadcast %77 : vector<1x64xf32> to vector<64x64xf32>
    %79 = arith.addf %76, %78 : vector<64x64xf32>
    %cst_49 = arith.constant 0.000000e+00 : f32
    %80 = vector.broadcast %cst_49 : f32 to vector<64x64xf32>
    %81 = arith.maximumf %79, %80 : vector<64x64xf32>
    %82 = arith.truncf %81 : vector<64x64xf32> to vector<64x64xbf16>
    %c0_50 = arith.constant 0 : index
    %c0_51 = arith.constant 0 : index
    %83 = vector.load %arg19[%c0_50, %c0_51] : memref<64x32xbf16, #tpu.memory_space<vmem>>, vector<64x32xbf16>
    %cst_52 = arith.constant dense<0.000000e+00> : vector<64x32xf32>
    %84 = tpu.matmul %82, %83, %cst_52 {dimension_numbers = #tpu.dot_dimension_numbers<[1], [0], [0], [1], [0, 0, 1, 1], [], []>} : vector<64x64xbf16>, vector<64x32xbf16>, vector<64x32xf32> -> vector<64x32xf32>
    %85 = arith.addf %73, %84 : vector<64x32xf32>
    %c0_53 = arith.constant 0 : index
    %c0_54 = arith.constant 0 : index
    %86 = vector.load %arg20[%c0_53, %c0_54] : memref<1x32xf32, #tpu.memory_space<vmem>>, vector<1x32xf32>
    %87 = vector.broadcast %86 : vector<1x32xf32> to vector<64x32xf32>
    %88 = arith.addf %85, %87 : vector<64x32xf32>
    %89 = vector.extract_strided_slice %40 {offsets = [0, 64], sizes = [1, 32], strides = [1, 1]} : vector<1x128xf32> to vector<1x32xf32>
    %90 = vector.extract_strided_slice %40 {offsets = [0, 96], sizes = [1, 1], strides = [1, 1]} : vector<1x128xf32> to vector<1x1xf32>
    %91 = arith.truncf %89 : vector<1x32xf32> to vector<1x32xbf16>
    %92 = arith.truncf %88 : vector<64x32xf32> to vector<64x32xbf16>
    %cst_55 = arith.constant dense<0.000000e+00> : vector<1x64xf32>
    %93 = tpu.matmul %91, %92, %cst_55 {dimension_numbers = #tpu.dot_dimension_numbers<[1], [1], [0], [0], [0, 0, 1, 0], [], []>} : vector<1x32xbf16>, vector<64x32xbf16>, vector<1x64xf32> -> vector<1x64xf32>
    %94 = vector.broadcast %90 : vector<1x1xf32> to vector<1x64xf32>
    %95 = arith.addf %93, %94 : vector<1x64xf32>
    %c0_56 = arith.constant 0 : index
    %c0_57 = arith.constant 0 : index
    %c0_58 = arith.constant 0 : index
    %96 = vector.load %arg21[%c0_56, %c0_57, %c0_58] : memref<1x1x64xf32, #tpu.memory_space<vmem>>, vector<1x1x64xf32>
    %97 = vector.shape_cast %96 : vector<1x1x64xf32> to vector<1x64xf32>
    %98 = vector.shape_cast %95 : vector<1x64xf32> to vector<1x1x64xf32>
    tpu.vector_store %arg21[%c0_56, %c0_57, %c0_58], %98 {strides = array<i32>} : memref<1x1x64xf32, #tpu.memory_space<vmem>>, vector<1x1x64xf32>,
    return
  }
  func.func @transform_0(%arg0: i32, %arg1: i32) -> (i32, i32, i32) {
    %c0_i32 = arith.constant 0 : i32
    %c0_i32_0 = arith.constant 0 : i32
    return %arg0, %arg1, %c0_i32 : i32, i32, i32
  }
  func.func @transform_1(%arg0: i32, %arg1: i32) -> (i32, i32, i32) {
    %c0_i32 = arith.constant 0 : i32
    %c0_i32_0 = arith.constant 0 : i32
    %c0_i32_1 = arith.constant 0 : i32
    return %arg0, %c0_i32, %c0_i32_0 : i32, i32, i32
  }
  func.func @transform_2(%arg0: i32, %arg1: i32) -> (i32, i32) {
    %c0_i32 = arith.constant 0 : i32
    %c0_i32_0 = arith.constant 0 : i32
    return %arg0, %c0_i32 : i32, i32
  }
  func.func @transform_3(%arg0: i32, %arg1: i32) -> (i32, i32) {
    %c0_i32 = arith.constant 0 : i32
    %c0_i32_0 = arith.constant 0 : i32
    return %arg0, %c0_i32 : i32, i32
  }
  func.func @transform_4(%arg0: i32, %arg1: i32) -> (i32, i32, i32) {
    %c0_i32 = arith.constant 0 : i32
    %c0_i32_0 = arith.constant 0 : i32
    %c0_i32_1 = arith.constant 0 : i32
    return %arg0, %c0_i32, %c0_i32_0 : i32, i32, i32
  }
  func.func @transform_5(%arg0: i32, %arg1: i32) -> (i32, i32) {
    %c0_i32 = arith.constant 0 : i32
    %c0_i32_0 = arith.constant 0 : i32
    %c0_i32_1 = arith.constant 0 : i32
    return %c0_i32, %c0_i32_0 : i32, i32
  }
  func.func @transform_6(%arg0: i32, %arg1: i32) -> (i32, i32) {
    %c0_i32 = arith.constant 0 : i32
    %c0_i32_0 = arith.constant 0 : i32
    %c0_i32_1 = arith.constant 0 : i32
    return %c0_i32, %c0_i32_0 : i32, i32
  }
  func.func @transform_7(%arg0: i32, %arg1: i32) -> (i32, i32) {
    %c0_i32 = arith.constant 0 : i32
    %c0_i32_0 = arith.constant 0 : i32
    %c0_i32_1 = arith.constant 0 : i32
    return %c0_i32, %c0_i32_0 : i32, i32
  }
  func.func @transform_8(%arg0: i32, %arg1: i32) -> (i32, i32) {
    %c0_i32 = arith.constant 0 : i32
    %c0_i32_0 = arith.constant 0 : i32
    %c0_i32_1 = arith.constant 0 : i32
    return %c0_i32, %c0_i32_0 : i32, i32
  }
  func.func @transform_9(%arg0: i32, %arg1: i32) -> (i32, i32) {
    %c0_i32 = arith.constant 0 : i32
    %c0_i32_0 = arith.constant 0 : i32
    %c0_i32_1 = arith.constant 0 : i32
    return %c0_i32, %c0_i32_0 : i32, i32
  }
  func.func @transform_10(%arg0: i32, %arg1: i32) -> (i32, i32) {
    %c0_i32 = arith.constant 0 : i32
    %c0_i32_0 = arith.constant 0 : i32
    %c0_i32_1 = arith.constant 0 : i32
    return %c0_i32, %c0_i32_0 : i32, i32
  }
  func.func @transform_11(%arg0: i32, %arg1: i32) -> (i32, i32) {
    %c0_i32 = arith.constant 0 : i32
    %c0_i32_0 = arith.constant 0 : i32
    %c0_i32_1 = arith.constant 0 : i32
    return %c0_i32, %c0_i32_0 : i32, i32
  }
  func.func @transform_12(%arg0: i32, %arg1: i32) -> (i32, i32) {
    %c0_i32 = arith.constant 0 : i32
    %c0_i32_0 = arith.constant 0 : i32
    %c0_i32_1 = arith.constant 0 : i32
    return %c0_i32, %c0_i32_0 : i32, i32
  }
  func.func @transform_13(%arg0: i32, %arg1: i32) -> (i32, i32) {
    %c0_i32 = arith.constant 0 : i32
    %c0_i32_0 = arith.constant 0 : i32
    %c0_i32_1 = arith.constant 0 : i32
    return %c0_i32, %c0_i32_0 : i32, i32
  }
  func.func @transform_14(%arg0: i32, %arg1: i32) -> (i32, i32) {
    %c0_i32 = arith.constant 0 : i32
    %c0_i32_0 = arith.constant 0 : i32
    %c0_i32_1 = arith.constant 0 : i32
    return %c0_i32, %c0_i32_0 : i32, i32
  }
  func.func @transform_15(%arg0: i32, %arg1: i32) -> (i32, i32) {
    %c0_i32 = arith.constant 0 : i32
    %c0_i32_0 = arith.constant 0 : i32
    %c0_i32_1 = arith.constant 0 : i32
    return %c0_i32, %c0_i32_0 : i32, i32
  }
  func.func @transform_16(%arg0: i32, %arg1: i32) -> (i32, i32) {
    %c0_i32 = arith.constant 0 : i32
    %c0_i32_0 = arith.constant 0 : i32
    %c0_i32_1 = arith.constant 0 : i32
    return %c0_i32, %c0_i32_0 : i32, i32
  }
  func.func @transform_17(%arg0: i32, %arg1: i32) -> (i32, i32) {
    %c0_i32 = arith.constant 0 : i32
    %c0_i32_0 = arith.constant 0 : i32
    %c0_i32_1 = arith.constant 0 : i32
    return %c0_i32, %c0_i32_0 : i32, i32
  }
  func.func @transform_18(%arg0: i32, %arg1: i32) -> (i32, i32) {
    %c0_i32 = arith.constant 0 : i32
    %c0_i32_0 = arith.constant 0 : i32
    %c0_i32_1 = arith.constant 0 : i32
    return %c0_i32, %c0_i32_0 : i32, i32
  }
  func.func @transform_19(%arg0: i32, %arg1: i32) -> (i32, i32, i32) {
    %c0_i32 = arith.constant 0 : i32
    %c0_i32_0 = arith.constant 0 : i32
    return %arg0, %c0_i32, %arg1 : i32, i32, i32
  }
}

module attributes {stable_mosaic.version = 11 : i64} {
  func.func @_text_kernel(%arg0: i32, %arg1: memref<16x32xbf16, #tpu.memory_space<vmem>>, %arg2: memref<2x16xf32, #tpu.memory_space<vmem>>, %arg3: memref<32x32xbf16, #tpu.memory_space<vmem>>, %arg4: memref<1x32xf32, #tpu.memory_space<vmem>>, %arg5: memref<32x32xbf16, #tpu.memory_space<vmem>>, %arg6: memref<1x32xf32, #tpu.memory_space<vmem>>, %arg7: memref<32x32xbf16, #tpu.memory_space<vmem>>, %arg8: memref<1x32xf32, #tpu.memory_space<vmem>>, %arg9: memref<32x128xbf16, #tpu.memory_space<vmem>>, %arg10: memref<1x128xf32, #tpu.memory_space<vmem>>, %arg11: memref<16x32xbf16, #tpu.memory_space<vmem>>, %arg12: memref<16x32xbf16, #tpu.memory_space<vmem>>, %arg13: memref<2x1x128xf32, #tpu.memory_space<vmem>>) attributes {dimension_semantics = [#tpu.dimension_semantics<arbitrary>], iteration_bounds = array<i64: 1>, scalar_prefetch = 0 : i64, scratch_operands = 0 : i64, tpu.core_type = #tpu.core_type<tc>, window_params = [{pipeline_mode = #tpu.pipeline_mode<synchronous>, transform_indices = @transform_0, window_bounds = array<i64: 16, 32>}, {pipeline_mode = #tpu.pipeline_mode<synchronous>, transform_indices = @transform_1, window_bounds = array<i64: 2, 16>}, {pipeline_mode = #tpu.pipeline_mode<synchronous>, transform_indices = @transform_2, window_bounds = array<i64: 32, 32>}, {pipeline_mode = #tpu.pipeline_mode<synchronous>, transform_indices = @transform_3, window_bounds = array<i64: 1, 32>}, {pipeline_mode = #tpu.pipeline_mode<synchronous>, transform_indices = @transform_4, window_bounds = array<i64: 32, 32>}, {pipeline_mode = #tpu.pipeline_mode<synchronous>, transform_indices = @transform_5, window_bounds = array<i64: 1, 32>}, {pipeline_mode = #tpu.pipeline_mode<synchronous>, transform_indices = @transform_6, window_bounds = array<i64: 32, 32>}, {pipeline_mode = #tpu.pipeline_mode<synchronous>, transform_indices = @transform_7, window_bounds = array<i64: 1, 32>}, {pipeline_mode = #tpu.pipeline_mode<synchronous>, transform_indices = @transform_8, window_bounds = array<i64: 32, 128>}, {pipeline_mode = #tpu.pipeline_mode<synchronous>, transform_indices = @transform_9, window_bounds = array<i64: 1, 128>}, {pipeline_mode = #tpu.pipeline_mode<synchronous>, transform_indices = @transform_10, window_bounds = array<i64: 16, 32>}, {pipeline_mode = #tpu.pipeline_mode<synchronous>, transform_indices = @transform_11, window_bounds = array<i64: 16, 32>}, {pipeline_mode = #tpu.pipeline_mode<synchronous>, transform_indices = @transform_12, window_bounds = array<i64: 2, 1, 128>}]} {
    %c0 = arith.constant 0 : index
    %c0_0 = arith.constant 0 : index
    %0 = vector.load %arg1[%c0, %c0_0] : memref<16x32xbf16, #tpu.memory_space<vmem>>, vector<16x32xbf16>
    %c0_1 = arith.constant 0 : index
    %c0_2 = arith.constant 0 : index
    %1 = vector.load %arg3[%c0_1, %c0_2] : memref<32x32xbf16, #tpu.memory_space<vmem>>, vector<32x32xbf16>
    %cst = arith.constant dense<0.000000e+00> : vector<16x32xf32>
    %2 = tpu.matmul %0, %1, %cst {dimension_numbers = #tpu.dot_dimension_numbers<[1], [0], [0], [1], [0, 0, 1, 1], [], []>} : vector<16x32xbf16>, vector<32x32xbf16>, vector<16x32xf32> -> vector<16x32xf32>
    %c0_3 = arith.constant 0 : index
    %c0_4 = arith.constant 0 : index
    %3 = vector.load %arg4[%c0_3, %c0_4] : memref<1x32xf32, #tpu.memory_space<vmem>>, vector<1x32xf32>
    %4 = vector.broadcast %3 : vector<1x32xf32> to vector<16x32xf32>
    %5 = arith.addf %2, %4 : vector<16x32xf32>
    %6 = arith.truncf %5 : vector<16x32xf32> to vector<16x32xbf16>
    %c0_5 = arith.constant 0 : index
    %c0_6 = arith.constant 0 : index
    %7 = vector.load %arg5[%c0_5, %c0_6] : memref<32x32xbf16, #tpu.memory_space<vmem>>, vector<32x32xbf16>
    %cst_7 = arith.constant dense<0.000000e+00> : vector<16x32xf32>
    %8 = tpu.matmul %6, %7, %cst_7 {dimension_numbers = #tpu.dot_dimension_numbers<[1], [0], [0], [1], [0, 0, 1, 1], [], []>} : vector<16x32xbf16>, vector<32x32xbf16>, vector<16x32xf32> -> vector<16x32xf32>
    %c0_8 = arith.constant 0 : index
    %c0_9 = arith.constant 0 : index
    %9 = vector.load %arg6[%c0_8, %c0_9] : memref<1x32xf32, #tpu.memory_space<vmem>>, vector<1x32xf32>
    %10 = vector.broadcast %9 : vector<1x32xf32> to vector<16x32xf32>
    %11 = arith.addf %8, %10 : vector<16x32xf32>
    %c0_10 = arith.constant 0 : index
    %c0_11 = arith.constant 0 : index
    %12 = vector.load %arg7[%c0_10, %c0_11] : memref<32x32xbf16, #tpu.memory_space<vmem>>, vector<32x32xbf16>
    %cst_12 = arith.constant dense<0.000000e+00> : vector<16x32xf32>
    %13 = tpu.matmul %6, %12, %cst_12 {dimension_numbers = #tpu.dot_dimension_numbers<[1], [0], [0], [1], [0, 0, 1, 1], [], []>} : vector<16x32xbf16>, vector<32x32xbf16>, vector<16x32xf32> -> vector<16x32xf32>
    %c0_13 = arith.constant 0 : index
    %c0_14 = arith.constant 0 : index
    %14 = vector.load %arg8[%c0_13, %c0_14] : memref<1x32xf32, #tpu.memory_space<vmem>>, vector<1x32xf32>
    %15 = vector.broadcast %14 : vector<1x32xf32> to vector<16x32xf32>
    %16 = arith.addf %13, %15 : vector<16x32xf32>
    %17 = arith.truncf %11 : vector<16x32xf32> to vector<16x32xbf16>
    %c0_15 = arith.constant 0 : index
    %c0_16 = arith.constant 0 : index
    %18 = vector.load %arg11[%c0_15, %c0_16] : memref<16x32xbf16, #tpu.memory_space<vmem>>, vector<16x32xbf16>
    tpu.vector_store %arg11[%c0_15, %c0_16], %17 {strides = array<i32>} : memref<16x32xbf16, #tpu.memory_space<vmem>>, vector<16x32xbf16>,
    %19 = arith.truncf %16 : vector<16x32xf32> to vector<16x32xbf16>
    %c0_17 = arith.constant 0 : index
    %c0_18 = arith.constant 0 : index
    %20 = vector.load %arg12[%c0_17, %c0_18] : memref<16x32xbf16, #tpu.memory_space<vmem>>, vector<16x32xbf16>
    tpu.vector_store %arg12[%c0_17, %c0_18], %19 {strides = array<i32>} : memref<16x32xbf16, #tpu.memory_space<vmem>>, vector<16x32xbf16>,
    %c0_19 = arith.constant 0 : index
    %c0_20 = arith.constant 0 : index
    %21 = vector.load %arg2[%c0_19, %c0_20] : memref<2x16xf32, #tpu.memory_space<vmem>>, vector<2x16xf32>
    %cst_21 = arith.constant dense<0.000000e+00> : vector<2xf32>
    %22 = vector.multi_reduction <add>, %21, %cst_21 [1] : vector<2x16xf32> to vector<2xf32>
    %23 = vector.shape_cast %22 : vector<2xf32> to vector<2x1xf32>
    %cst_22 = arith.constant 1.000000e+00 : f32
    %24 = vector.broadcast %cst_22 : f32 to vector<2x1xf32>
    %25 = arith.maximumf %23, %24 : vector<2x1xf32>
    %26 = arith.truncf %21 : vector<2x16xf32> to vector<2x16xbf16>
    %cst_23 = arith.constant dense<0.000000e+00> : vector<2x32xf32>
    %27 = tpu.matmul %26, %6, %cst_23 {dimension_numbers = #tpu.dot_dimension_numbers<[1], [0], [0], [1], [0, 0, 1, 1], [], []>} : vector<2x16xbf16>, vector<16x32xbf16>, vector<2x32xf32> -> vector<2x32xf32>
    %28 = vector.broadcast %25 : vector<2x1xf32> to vector<2x32xf32>
    %29 = arith.divf %27, %28 : vector<2x32xf32>
    %30 = arith.truncf %29 : vector<2x32xf32> to vector<2x32xbf16>
    %c0_24 = arith.constant 0 : index
    %c0_25 = arith.constant 0 : index
    %31 = vector.load %arg9[%c0_24, %c0_25] : memref<32x128xbf16, #tpu.memory_space<vmem>>, vector<32x128xbf16>
    %cst_26 = arith.constant dense<0.000000e+00> : vector<2x128xf32>
    %32 = tpu.matmul %30, %31, %cst_26 {dimension_numbers = #tpu.dot_dimension_numbers<[1], [0], [0], [1], [0, 0, 1, 1], [], []>} : vector<2x32xbf16>, vector<32x128xbf16>, vector<2x128xf32> -> vector<2x128xf32>
    %c0_27 = arith.constant 0 : index
    %c0_28 = arith.constant 0 : index
    %33 = vector.load %arg10[%c0_27, %c0_28] : memref<1x128xf32, #tpu.memory_space<vmem>>, vector<1x128xf32>
    %34 = vector.broadcast %33 : vector<1x128xf32> to vector<2x128xf32>
    %35 = arith.addf %32, %34 : vector<2x128xf32>
    %36 = vector.shape_cast %35 : vector<2x128xf32> to vector<2x1x128xf32>
    %c0_29 = arith.constant 0 : index
    %c0_30 = arith.constant 0 : index
    %c0_31 = arith.constant 0 : index
    %37 = vector.load %arg13[%c0_29, %c0_30, %c0_31] : memref<2x1x128xf32, #tpu.memory_space<vmem>>, vector<2x1x128xf32>
    tpu.vector_store %arg13[%c0_29, %c0_30, %c0_31], %36 {strides = array<i32>} : memref<2x1x128xf32, #tpu.memory_space<vmem>>, vector<2x1x128xf32>,
    return
  }
  func.func @transform_0(%arg0: i32) -> (i32, i32) {
    %c0_i32 = arith.constant 0 : i32
    %c0_i32_0 = arith.constant 0 : i32
    %c0_i32_1 = arith.constant 0 : i32
    return %c0_i32, %c0_i32_0 : i32, i32
  }
  func.func @transform_1(%arg0: i32) -> (i32, i32) {
    %c0_i32 = arith.constant 0 : i32
    %c0_i32_0 = arith.constant 0 : i32
    %c0_i32_1 = arith.constant 0 : i32
    return %c0_i32, %c0_i32_0 : i32, i32
  }
  func.func @transform_2(%arg0: i32) -> (i32, i32) {
    %c0_i32 = arith.constant 0 : i32
    %c0_i32_0 = arith.constant 0 : i32
    %c0_i32_1 = arith.constant 0 : i32
    return %c0_i32, %c0_i32_0 : i32, i32
  }
  func.func @transform_3(%arg0: i32) -> (i32, i32) {
    %c0_i32 = arith.constant 0 : i32
    %c0_i32_0 = arith.constant 0 : i32
    %c0_i32_1 = arith.constant 0 : i32
    return %c0_i32, %c0_i32_0 : i32, i32
  }
  func.func @transform_4(%arg0: i32) -> (i32, i32) {
    %c0_i32 = arith.constant 0 : i32
    %c0_i32_0 = arith.constant 0 : i32
    %c0_i32_1 = arith.constant 0 : i32
    return %c0_i32, %c0_i32_0 : i32, i32
  }
  func.func @transform_5(%arg0: i32) -> (i32, i32) {
    %c0_i32 = arith.constant 0 : i32
    %c0_i32_0 = arith.constant 0 : i32
    %c0_i32_1 = arith.constant 0 : i32
    return %c0_i32, %c0_i32_0 : i32, i32
  }
  func.func @transform_6(%arg0: i32) -> (i32, i32) {
    %c0_i32 = arith.constant 0 : i32
    %c0_i32_0 = arith.constant 0 : i32
    %c0_i32_1 = arith.constant 0 : i32
    return %c0_i32, %c0_i32_0 : i32, i32
  }
  func.func @transform_7(%arg0: i32) -> (i32, i32) {
    %c0_i32 = arith.constant 0 : i32
    %c0_i32_0 = arith.constant 0 : i32
    %c0_i32_1 = arith.constant 0 : i32
    return %c0_i32, %c0_i32_0 : i32, i32
  }
  func.func @transform_8(%arg0: i32) -> (i32, i32) {
    %c0_i32 = arith.constant 0 : i32
    %c0_i32_0 = arith.constant 0 : i32
    %c0_i32_1 = arith.constant 0 : i32
    return %c0_i32, %c0_i32_0 : i32, i32
  }
  func.func @transform_9(%arg0: i32) -> (i32, i32) {
    %c0_i32 = arith.constant 0 : i32
    %c0_i32_0 = arith.constant 0 : i32
    %c0_i32_1 = arith.constant 0 : i32
    return %c0_i32, %c0_i32_0 : i32, i32
  }
  func.func @transform_10(%arg0: i32) -> (i32, i32) {
    %c0_i32 = arith.constant 0 : i32
    %c0_i32_0 = arith.constant 0 : i32
    %c0_i32_1 = arith.constant 0 : i32
    return %c0_i32, %c0_i32_0 : i32, i32
  }
  func.func @transform_11(%arg0: i32) -> (i32, i32) {
    %c0_i32 = arith.constant 0 : i32
    %c0_i32_0 = arith.constant 0 : i32
    %c0_i32_1 = arith.constant 0 : i32
    return %c0_i32, %c0_i32_0 : i32, i32
  }
  func.func @transform_12(%arg0: i32) -> (i32, i32, i32) {
    %c0_i32 = arith.constant 0 : i32
    %c0_i32_0 = arith.constant 0 : i32
    %c0_i32_1 = arith.constant 0 : i32
    %c0_i32_2 = arith.constant 0 : i32
    return %c0_i32, %c0_i32_0, %c0_i32_1 : i32, i32, i32
  }
}

</mosaic_0001>

<llo_original>
// kernel: caris_forward.2
$region0: #{caris_forward.2}
  #allocation0 [shape = 'u32[]', space=smem, size = 0x4, offset = 0x4, fixed_abs, tag = 'smem constant byte address 0x4 - core index']
  #allocation1 [shape = 'u32[144,128]{1,0:T(1,128)}', space=vmem, size = 0x12000, scoped, tag = 'internal scratch']
  %s0 = inlined_call_operand.vmem [shape: bf16[16,32], index: 0, kind: input, shape index: {}]
  %s1 = inlined_call_operand.vmem [shape: f32[2,16], index: 1, kind: input, shape index: {}]
  %s2 = inlined_call_operand.vmem [shape: bf16[32,32], index: 2, kind: input, shape index: {}]
  %s3 = inlined_call_operand.vmem [shape: f32[1,32], index: 3, kind: input, shape index: {}]
  %s4 = inlined_call_operand.vmem [shape: bf16[32,32], index: 4, kind: input, shape index: {}]
  %s5 = inlined_call_operand.vmem [shape: f32[1,32], index: 5, kind: input, shape index: {}]
  %s6 = inlined_call_operand.vmem [shape: bf16[32,32], index: 6, kind: input, shape index: {}]
  %s7 = inlined_call_operand.vmem [shape: f32[1,32], index: 7, kind: input, shape index: {}]
  %s8 = inlined_call_operand.vmem [shape: bf16[32,128], index: 8, kind: input, shape index: {}]
  %s9 = inlined_call_operand.vmem [shape: f32[1,128], index: 9, kind: input, shape index: {}]
  %s10 = inlined_call_operand.vmem [shape: bf16[16,32], index: 10, kind: output, shape index: {0}]
  %s11 = inlined_call_operand.vmem [shape: bf16[16,32], index: 11, kind: output, shape index: {1}]
  %s12 = inlined_call_operand.vmem [shape: f32[2,1,128], index: 12, kind: output, shape index: {2}]
  %13 = xla_tuple %s10, %s11, %s12
  %s14 = sld [smem:[#allocation0]]
  $region66: #{caris_forward.2} parent=0
    _
  %s16 = ssub.s32 1, %s14
  %s17 = scalar_select 0, %s16, %s14
  // Predicated region
  $region2: #{caris_forward.2} parent=0 // pred_check
    _
  $region3: #{caris_forward.2} parent=0 // pred_check_branch
    %19 = sbr.rel (0) target = $region5
  $region4: #{caris_forward.2} parent=0 // pred_region
    _
  $region5: #{caris_forward.2} parent=0 // pred_fallthru
    _
  // Predicated region
  $region6: #{caris_forward.2} parent=0 // pred_check
    _
  $region7: #{caris_forward.2} parent=0 // pred_check_branch
    %21 = sbr.rel (0) target = $region9
  $region8: #{caris_forward.2} parent=0 // pred_region
    _
  $region9: #{caris_forward.2} parent=0 // pred_fallthru
    _
  // Predicated region
  $region10: #{caris_forward.2} parent=0 // pred_check
    _
  $region11: #{caris_forward.2} parent=0 // pred_check_branch
    %23 = sbr.rel (0) target = $region13
  $region12: #{caris_forward.2} parent=0 // pred_region
    _
  $region13: #{caris_forward.2} parent=0 // pred_fallthru
    _
  // Predicated region
  $region14: #{caris_forward.2} parent=0 // pred_check
    _
  $region15: #{caris_forward.2} parent=0 // pred_check_branch
    %25 = sbr.rel (0) target = $region17
  $region16: #{caris_forward.2} parent=0 // pred_region
    _
  $region17: #{caris_forward.2} parent=0 // pred_fallthru
    _
  // Predicated region
  $region18: #{caris_forward.2} parent=0 // pred_check
    _
  $region19: #{caris_forward.2} parent=0 // pred_check_branch
    %27 = sbr.rel (0) target = $region21
  $region20: #{caris_forward.2} parent=0 // pred_region
    _
  $region21: #{caris_forward.2} parent=0 // pred_fallthru
    _
  // Predicated region
  $region22: #{caris_forward.2} parent=0 // pred_check
    _
  $region23: #{caris_forward.2} parent=0 // pred_check_branch
    %29 = sbr.rel (0) target = $region25
  $region24: #{caris_forward.2} parent=0 // pred_region
    _
  $region25: #{caris_forward.2} parent=0 // pred_fallthru
    _
  // Predicated region
  $region26: #{caris_forward.2} parent=0 // pred_check
    _
  $region27: #{caris_forward.2} parent=0 // pred_check_branch
    %31 = sbr.rel (0) target = $region29
  $region28: #{caris_forward.2} parent=0 // pred_region
    _
  $region29: #{caris_forward.2} parent=0 // pred_fallthru
    _
  // Predicated region
  $region30: #{caris_forward.2} parent=0 // pred_check
    _
  $region31: #{caris_forward.2} parent=0 // pred_check_branch
    %33 = sbr.rel (0) target = $region33
  $region32: #{caris_forward.2} parent=0 // pred_region
    _
  $region33: #{caris_forward.2} parent=0 // pred_fallthru
    _
  // Predicated region
  $region34: #{caris_forward.2} parent=0 // pred_check
    _
  $region35: #{caris_forward.2} parent=0 // pred_check_branch
    %35 = sbr.rel (0) target = $region37
  $region36: #{caris_forward.2} parent=0 // pred_region
    _
  $region37: #{caris_forward.2} parent=0 // pred_fallthru
    _
  // Predicated region
  $region38: #{caris_forward.2} parent=0 // pred_check
    _
  $region39: #{caris_forward.2} parent=0 // pred_check_branch
    %37 = sbr.rel (0) target = $region41
  $region40: #{caris_forward.2} parent=0 // pred_region
    _
  $region41: #{caris_forward.2} parent=0 // pred_fallthru
    _
  %v39 = vld [vmem:[%s0] sm:$0xf]
  %v40 = vld [vmem:[%s0 + $0x4] sm:$0xf]
  %v41 = vld [vmem:[%s2] sm:$0xf]
  %v42 = vld [vmem:[%s2 + $0x4] sm:$0xf]
  %v43 = vld [vmem:[%s2 + $0x8] sm:$0xf]
  %v44 = vld [vmem:[%s2 + $0xc] sm:$0xf]
  %v45 = vld [vmem:[%s3] sm:$0x1]
  %v47 = vlaneseq
  %v48 = vshrl.u32 %v47, 7
  %v49 = vsub.s32 0, %v48
  %v50 = vrot.slane %v45, %v49
  %v54 = vunpack.c.l.b16 %v39
  %v55 = vunpack.c.l.b16 %v40
  %v56 = vpack.c.b16 %v55, %v54
  %v61 = vunpack.c.l.b16 %v41
  %v62 = vunpack.c.l.b16 %v42
  %v63 = vunpack.c.l.b16 %v43
  %v64 = vunpack.c.l.b16 %v44
  %v65 = vpack.c.b16 %v62, %v61
  %v66 = vpack.c.b16 %v64, %v63
  %vm69 = vcmask 261120
  %v71 = vsel %vm69, %v56, 0
  %73 = vmatprep.subr.bf16.mxu0 0
  %74 = vmatpush1.bf16.msra.mxu0 %v65
  %75 = vmatprep.subr.bf16.mxu0 0
  %76 = vmatpush1.bf16.msra.mxu0 %v66
  %77 = vmatprep.subr.bf16.mxu0 0
  %78 = vmatpush1.bf16.msra.mxu0 0
  %79 = vmatprep.subr.bf16.mxu0 0
  %80 = vmatpush1.bf16.msra.mxu0 0
  %81 = vmatprep.subr.bf16.mxu0 0
  %82 = vmatpush1.bf16.msra.mxu0 0
  %83 = vmatprep.subr.bf16.mxu0 0
  %84 = vmatpush1.bf16.msra.mxu0 0
  %85 = vmatprep.subr.bf16.mxu0 0
  %86 = vmatpush1.bf16.msra.mxu0 0
  %87 = vmatprep.subr.bf16.mxu0 0
  %88 = vmatpush1.bf16.msra.mxu0 0
  %89 = vmatprep.subr.bf16.mxu0 0
  %90 = vmatpush1.bf16.msra.mxu0 0
  %91 = vmatprep.subr.bf16.mxu0 0
  %92 = vmatpush1.bf16.msra.mxu0 0
  %93 = vmatprep.subr.bf16.mxu0 0
  %94 = vmatpush1.bf16.msra.mxu0 0
  %95 = vmatprep.subr.bf16.mxu0 0
  %96 = vmatpush1.bf16.msra.mxu0 0
  %97 = vmatprep.subr.bf16.mxu0 0
  %98 = vmatpush1.bf16.msra.mxu0 0
  %99 = vmatprep.subr.bf16.mxu0 0
  %100 = vmatpush1.bf16.msra.mxu0 0
  %101 = vmatprep.subr.bf16.mxu0 0
  %102 = vmatpush1.bf16.msra.mxu0 0
  %103 = vmatprep.subr.bf16.mxu0 0
  %104 = vmatpush1.bf16.msra.mxu0 0
  %105 = vmatprep.mubr.bf16.mxu0 0
  %106 = vmatmul.mubr.bf16.gmra.mrb[0].mxu0 %v71
  %v107 = vpop.f32.mrb[0].mxu0
  %v108 = vadd.f32 %v50, %v107
  %v109 = vpop.f32.mrb[0].mxu0
  %v110 = vpop.f32.mrb[0].mxu0
  %v111 = vadd.f32 %v50, %v110
  %v112 = vpop.f32.mrb[0].mxu0
  %113 = vdwg.mxu0
  %v114 = vpack.c.bf16 %v111, %v108
  %v115 = vld [vmem:[%s4] sm:$0xf]
  %v116 = vld [vmem:[%s4 + $0x4] sm:$0xf]
  %v117 = vld [vmem:[%s4 + $0x8] sm:$0xf]
  %v118 = vld [vmem:[%s4 + $0xc] sm:$0xf]
  %v119 = vld [vmem:[%s5] sm:$0x1]
  %v121 = vlaneseq
  %v122 = vshrl.u32 %v121, 7
  %v123 = vsub.s32 0, %v122
  %v124 = vrot.slane %v119, %v123
  %v130 = vunpack.c.l.b16 %v115
  %v131 = vunpack.c.l.b16 %v116
  %v132 = vunpack.c.l.b16 %v117
  %v133 = vunpack.c.l.b16 %v118
  %v134 = vpack.c.b16 %v131, %v130
  %v135 = vpack.c.b16 %v133, %v132
  %v139 = vsel %vm69, %v114, 0
  %141 = vmatprep.subr.bf16.mxu0 0
  %142 = vmatpush1.bf16.msra.mxu0 %v134
  %143 = vmatprep.subr.bf16.mxu0 0
  %144 = vmatpush1.bf16.msra.mxu0 %v135
  %145 = vmatprep.subr.bf16.mxu0 0
  %146 = vmatpush1.bf16.msra.mxu0 0
  %147 = vmatprep.subr.bf16.mxu0 0
  %148 = vmatpush1.bf16.msra.mxu0 0
  %149 = vmatprep.subr.bf16.mxu0 0
  %150 = vmatpush1.bf16.msra.mxu0 0
  %151 = vmatprep.subr.bf16.mxu0 0
  %152 = vmatpush1.bf16.msra.mxu0 0
  %153 = vmatprep.subr.bf16.mxu0 0
  %154 = vmatpush1.bf16.msra.mxu0 0
  %155 = vmatprep.subr.bf16.mxu0 0
  %156 = vmatpush1.bf16.msra.mxu0 0
  %157 = vmatprep.subr.bf16.mxu0 0
  %158 = vmatpush1.bf16.msra.mxu0 0
  %159 = vmatprep.subr.bf16.mxu0 0
  %160 = vmatpush1.bf16.msra.mxu0 0
  %161 = vmatprep.subr.bf16.mxu0 0
  %162 = vmatpush1.bf16.msra.mxu0 0
  %163 = vmatprep.subr.bf16.mxu0 0
  %164 = vmatpush1.bf16.msra.mxu0 0
  %165 = vmatprep.subr.bf16.mxu0 0
  %166 = vmatpush1.bf16.msra.mxu0 0
  %167 = vmatprep.subr.bf16.mxu0 0
  %168 = vmatpush1.bf16.msra.mxu0 0
  %169 = vmatprep.subr.bf16.mxu0 0
  %170 = vmatpush1.bf16.msra.mxu0 0
  %171 = vmatprep.subr.bf16.mxu0 0
  %172 = vmatpush1.bf16.msra.mxu0 0
  %173 = vmatprep.mubr.bf16.mxu0 0
  %174 = vmatmul.mubr.bf16.gmra.mrb[0].mxu0 %v139
  %v175 = vpop.f32.mrb[0].mxu0
  %v176 = vadd.f32 %v124, %v175
  %v177 = vpop.f32.mrb[0].mxu0
  %v178 = vpop.f32.mrb[0].mxu0
  %v179 = vadd.f32 %v124, %v178
  %v180 = vpop.f32.mrb[0].mxu0
  %181 = vdwg.mxu0
  %v182 = vld [vmem:[%s6] sm:$0xf]
  %v183 = vld [vmem:[%s6 + $0x4] sm:$0xf]
  %v184 = vld [vmem:[%s6 + $0x8] sm:$0xf]
  %v185 = vld [vmem:[%s6 + $0xc] sm:$0xf]
  %v186 = vld [vmem:[%s7] sm:$0x1]
  %v188 = vlaneseq
  %v189 = vshrl.u32 %v188, 7
  %v190 = vsub.s32 0, %v189
  %v191 = vrot.slane %v186, %v190
  %v197 = vunpack.c.l.b16 %v182
  %v198 = vunpack.c.l.b16 %v183
  %v199 = vunpack.c.l.b16 %v184
  %v200 = vunpack.c.l.b16 %v185
  %v201 = vpack.c.b16 %v198, %v197
  %v202 = vpack.c.b16 %v200, %v199
  %205 = vmatprep.subr.bf16.mxu0 0
  %206 = vmatpush1.bf16.msra.mxu0 %v201
  %207 = vmatprep.subr.bf16.mxu0 0
  %208 = vmatpush1.bf16.msra.mxu0 %v202
  %209 = vmatprep.subr.bf16.mxu0 0
  %210 = vmatpush1.bf16.msra.mxu0 0
  %211 = vmatprep.subr.bf16.mxu0 0
  %212 = vmatpush1.bf16.msra.mxu0 0
  %213 = vmatprep.subr.bf16.mxu0 0
  %214 = vmatpush1.bf16.msra.mxu0 0
  %215 = vmatprep.subr.bf16.mxu0 0
  %216 = vmatpush1.bf16.msra.mxu0 0
  %217 = vmatprep.subr.bf16.mxu0 0
  %218 = vmatpush1.bf16.msra.mxu0 0
  %219 = vmatprep.subr.bf16.mxu0 0
  %220 = vmatpush1.bf16.msra.mxu0 0
  %221 = vmatprep.subr.bf16.mxu0 0
  %222 = vmatpush1.bf16.msra.mxu0 0
  %223 = vmatprep.subr.bf16.mxu0 0
  %224 = vmatpush1.bf16.msra.mxu0 0
  %225 = vmatprep.subr.bf16.mxu0 0
  %226 = vmatpush1.bf16.msra.mxu0 0
  %227 = vmatprep.subr.bf16.mxu0 0
  %228 = vmatpush1.bf16.msra.mxu0 0
  %229 = vmatprep.subr.bf16.mxu0 0
  %230 = vmatpush1.bf16.msra.mxu0 0
  %231 = vmatprep.subr.bf16.mxu0 0
  %232 = vmatpush1.bf16.msra.mxu0 0
  %233 = vmatprep.subr.bf16.mxu0 0
  %234 = vmatpush1.bf16.msra.mxu0 0
  %235 = vmatprep.subr.bf16.mxu0 0
  %236 = vmatpush1.bf16.msra.mxu0 0
  %237 = vmatprep.mubr.bf16.mxu0 0
  %238 = vmatmul.mubr.bf16.gmra.mrb[0].mxu0 %v139
  %v239 = vpop.f32.mrb[0].mxu0
  %v240 = vadd.f32 %v191, %v239
  %v241 = vpop.f32.mrb[0].mxu0
  %v242 = vpop.f32.mrb[0].mxu0
  %v243 = vadd.f32 %v191, %v242
  %v244 = vpop.f32.mrb[0].mxu0
  %245 = vdwg.mxu0
  %v246 = vpack.c.bf16 %v179, %v176
  %v248 = vunpack.c.l.b16 %v246
  %v249 = vunpack.c.h.b16 %v246
  %v250 = vpack.c.b16 %v248, %v248
  %v251 = vpack.c.b16 %v249, %v249
  %vm254 = vcmask 257024
  %255 = vst.msk [vmem:[%s10] sm:$0xf] %vm254, %v250
  %256 = vst.msk [vmem:[%s10 + $0x4] sm:$0xf] %vm254, %v251
  %v257 = vpack.c.bf16 %v243, %v240
  %v259 = vunpack.c.l.b16 %v257
  %v260 = vunpack.c.h.b16 %v257
  %v261 = vpack.c.b16 %v259, %v259
  %v262 = vpack.c.b16 %v260, %v260
  %265 = vst.msk [vmem:[%s11] sm:$0xf] %vm254, %v261
  %266 = vst.msk [vmem:[%s11 + $0x4] sm:$0xf] %vm254, %v262
  %v267 = vld [vmem:[%s1] sm:$0x3]
  %vm268 = vcmask 123904
  %v269 = vsel %vm268, %v267, 0.0
  %270 = vadd.xlane.f32.xlu0 %v269
  %v271 = vpop.xlane.xlu0 %270
  %v272 = vmax.f32 %v271, 1.0
  %v273 = vpack.c.bf16 %v267, %v267
  %vm274 = vcmask 130048
  %v276 = vsel %vm274, %v273, 0
  %278 = vmatprep.subr.bf16.mxu0 0
  %279 = vmatpush1.bf16.msra.mxu0 %v114
  %280 = vmatprep.subr.bf16.mxu0 0
  %281 = vmatpush1.bf16.msra.mxu0 0
  %282 = vmatprep.subr.bf16.mxu0 0
  %283 = vmatpush1.bf16.msra.mxu0 0
  %284 = vmatprep.subr.bf16.mxu0 0
  %285 = vmatpush1.bf16.msra.mxu0 0
  %286 = vmatprep.subr.bf16.mxu0 0
  %287 = vmatpush1.bf16.msra.mxu0 0
  %288 = vmatprep.subr.bf16.mxu0 0
  %289 = vmatpush1.bf16.msra.mxu0 0
  %290 = vmatprep.subr.bf16.mxu0 0
  %291 = vmatpush1.bf16.msra.mxu0 0
  %292 = vmatprep.subr.bf16.mxu0 0
  %293 = vmatpush1.bf16.msra.mxu0 0
  %294 = vmatprep.subr.bf16.mxu0 0
  %295 = vmatpush1.bf16.msra.mxu0 0
  %296 = vmatprep.subr.bf16.mxu0 0
  %297 = vmatpush1.bf16.msra.mxu0 0
  %298 = vmatprep.subr.bf16.mxu0 0
  %299 = vmatpush1.bf16.msra.mxu0 0
  %300 = vmatprep.subr.bf16.mxu0 0
  %301 = vmatpush1.bf16.msra.mxu0 0
  %302 = vmatprep.subr.bf16.mxu0 0
  %303 = vmatpush1.bf16.msra.mxu0 0
  %304 = vmatprep.subr.bf16.mxu0 0
  %305 = vmatpush1.bf16.msra.mxu0 0
  %306 = vmatprep.subr.bf16.mxu0 0
  %307 = vmatpush1.bf16.msra.mxu0 0
  %308 = vmatprep.subr.bf16.mxu0 0
  %309 = vmatpush1.bf16.msra.mxu0 0
  %310 = vmatprep.mubr.bf16.mxu0 0
  %311 = vmatmul.mubr.bf16.gmra.mrb[0].mxu0 %v276
  %v312 = vpop.f32.mrb[0].mxu0
  %v313 = vadd.f32 0.0, %v312
  %v314 = vpop.f32.mrb[0].mxu0
  %v315 = vpop.f32.mrb[0].mxu0
  %v316 = vpop.f32.mrb[0].mxu0
  %317 = vdwg.mxu0
  %v318 = vrcp.pop %v272
  %v319 = vmul.f32 %v313, %v318
  %v320 = vpack.c.bf16 %v319, %v319
  %v321 = vld [vmem:[%s8] sm:$0xf]
  %v322 = vld [vmem:[%s8 + $0x4] sm:$0xf]
  %v323 = vld [vmem:[%s8 + $0x8] sm:$0xf]
  %v324 = vld [vmem:[%s8 + $0xc] sm:$0xf]
  %v325 = vld [vmem:[%s9] sm:$0x1]
  %v327 = vlaneseq
  %v328 = vshrl.u32 %v327, 7
  %v329 = vsub.s32 0, %v328
  %v330 = vrot.slane %v325, %v329
  %v336 = vunpack.c.l.b16 %v321
  %v337 = vunpack.c.l.b16 %v322
  %v338 = vunpack.c.l.b16 %v323
  %v339 = vunpack.c.l.b16 %v324
  %v340 = vpack.c.b16 %v337, %v336
  %v341 = vpack.c.b16 %v339, %v338
  %v345 = vsel %vm69, %v320, 0
  %347 = vmatprep.subr.bf16.mxu0 0
  %348 = vmatpush1.bf16.msra.mxu0 %v340
  %349 = vmatprep.subr.bf16.mxu0 0
  %350 = vmatpush1.bf16.msra.mxu0 %v341
  %351 = vmatprep.subr.bf16.mxu0 0
  %352 = vmatpush1.bf16.msra.mxu0 0
  %353 = vmatprep.subr.bf16.mxu0 0
  %354 = vmatpush1.bf16.msra.mxu0 0
  %355 = vmatprep.subr.bf16.mxu0 0
  %356 = vmatpush1.bf16.msra.mxu0 0
  %357 = vmatprep.subr.bf16.mxu0 0
  %358 = vmatpush1.bf16.msra.mxu0 0
  %359 = vmatprep.subr.bf16.mxu0 0
  %360 = vmatpush1.bf16.msra.mxu0 0
  %361 = vmatprep.subr.bf16.mxu0 0
  %362 = vmatpush1.bf16.msra.mxu0 0
  %363 = vmatprep.subr.bf16.mxu0 0
  %364 = vmatpush1.bf16.msra.mxu0 0
  %365 = vmatprep.subr.bf16.mxu0 0
  %366 = vmatpush1.bf16.msra.mxu0 0
  %367 = vmatprep.subr.bf16.mxu0 0
  %368 = vmatpush1.bf16.msra.mxu0 0
  %369 = vmatprep.subr.bf16.mxu0 0
  %370 = vmatpush1.bf16.msra.mxu0 0
  %371 = vmatprep.subr.bf16.mxu0 0
  %372 = vmatpush1.bf16.msra.mxu0 0
  %373 = vmatprep.subr.bf16.mxu0 0
  %374 = vmatpush1.bf16.msra.mxu0 0
  %375 = vmatprep.subr.bf16.mxu0 0
  %376 = vmatpush1.bf16.msra.mxu0 0
  %377 = vmatprep.subr.bf16.mxu0 0
  %378 = vmatpush1.bf16.msra.mxu0 0
  %379 = vmatprep.mubr.bf16.mxu0 0
  %380 = vmatmul.mubr.bf16.gmra.mrb[0].mxu0 %v345
  %v381 = vpop.f32.mrb[0].mxu0
  %v382 = vadd.f32 %v330, %v381
  %v383 = vpop.f32.mrb[0].mxu0
  %v384 = vpop.f32.mrb[0].mxu0
  %v385 = vpop.f32.mrb[0].mxu0
  %386 = vdwg.mxu0
  %v389 = vunpack.c.l.s4 1966171168
  %v390 = vunpack.c.0.s8 %v389
  %v391 = vlaneseq
  %v392 = vshrl.u32 %v391, 7
  %v393 = vsub.s32 %v390, %v392
  %v394 = vrot.slane %v382, %v393
  %v395 = vcombine.high %v394, %v394
  %v397 = vunpack.c.l.s4 1966171168
  %v398 = vunpack.c.0.s8 %v397
  %v399 = vlaneseq
  %v400 = vshrl.u32 %v399, 7
  %v401 = vsub.s32 %v398, %v400
  %v402 = vrot.slane %v394, %v401
  %v404 = vunpack.c.l.s4 1966171168
  %v405 = vunpack.c.0.s8 %v404
  %v406 = vlaneseq
  %v407 = vshrl.u32 %v406, 7
  %v408 = vsub.s32 %v405, %v407
  %v409 = vrot.slane %v395, %v408
  %412 = vst [vmem:[%s12] sm:$0x1] %v402
  %413 = vst [vmem:[%s12 + $0x1] sm:$0x1] %v409
  // Predicated region
  $region42: #{caris_forward.2} parent=0 // pred_check
    _
  $region43: #{caris_forward.2} parent=0 // pred_check_branch
    %415 = sbr.rel (0) target = $region45
  $region44: #{caris_forward.2} parent=0 // pred_region
    _
  $region45: #{caris_forward.2} parent=0 // pred_fallthru
    _
  // Predicated region
  $region46: #{caris_forward.2} parent=0 // pred_check
    _
  $region47: #{caris_forward.2} parent=0 // pred_check_branch
    %417 = sbr.rel (0) target = $region49
  $region48: #{caris_forward.2} parent=0 // pred_region
    _
  $region49: #{caris_forward.2} parent=0 // pred_fallthru
    _
  // Predicated region
  $region50: #{caris_forward.2} parent=0 // pred_check
    _
  $region51: #{caris_forward.2} parent=0 // pred_check_branch
    %419 = sbr.rel (0) target = $region53
  $region52: #{caris_forward.2} parent=0 // pred_region
    _
  $region53: #{caris_forward.2} parent=0 // pred_fallthru
    _
  // Predicated region
  $region54: #{caris_forward.2} parent=0 // pred_check
    _
  $region55: #{caris_forward.2} parent=0 // pred_check_branch
    %421 = sbr.rel (0) target = $region57
  $region56: #{caris_forward.2} parent=0 // pred_region
    _
  $region57: #{caris_forward.2} parent=0 // pred_fallthru
    _
  // Predicated region
  $region58: #{caris_forward.2} parent=0 // pred_check
    _
  $region59: #{caris_forward.2} parent=0 // pred_check_branch
    %423 = sbr.rel (0) target = $region61
  $region60: #{caris_forward.2} parent=0 // pred_region
    _
  $region61: #{caris_forward.2} parent=0 // pred_fallthru
    _
  // Predicated region
  $region62: #{caris_forward.2} parent=0 // pred_check
    _
  $region63: #{caris_forward.2} parent=0 // pred_check_branch
    %425 = sbr.rel (0) target = $region65
  $region64: #{caris_forward.2} parent=0 // pred_region
    _
  $region65: #{caris_forward.2} parent=0 // pred_fallthru
    _

// kernel: caris_forward.3
$region0: #{caris_forward.3}
  #allocation0 [shape = 'u32[]', space=smem, size = 0x4, offset = 0x4, fixed_abs, tag = 'smem constant byte address 0x4 - core index']
  #allocation1 [shape = 'u32[144,128]{1,0:T(1,128)}', space=vmem, size = 0x12000, scoped, tag = 'internal scratch']
  %s0 = inlined_call_operand.vmem [shape: bf16[2,64,12], index: 0, kind: input, shape index: {}]
  %s1 = inlined_call_operand.vmem [shape: f32[2,1,128], index: 1, kind: input, shape index: {}]
  %s2 = inlined_call_operand.vmem [shape: bf16[16,32], index: 2, kind: input, shape index: {}]
  %s3 = inlined_call_operand.vmem [shape: bf16[16,32], index: 3, kind: input, shape index: {}]
  %s4 = inlined_call_operand.vmem [shape: f32[2,1,8], index: 4, kind: input, shape index: {}]
  %s5 = inlined_call_operand.vmem [shape: bf16[12,32], index: 5, kind: input, shape index: {}]
  %s6 = inlined_call_operand.vmem [shape: f32[1,32], index: 6, kind: input, shape index: {}]
  %s7 = inlined_call_operand.vmem [shape: bf16[32,64], index: 7, kind: input, shape index: {}]
  %s8 = inlined_call_operand.vmem [shape: f32[1,64], index: 8, kind: input, shape index: {}]
  %s9 = inlined_call_operand.vmem [shape: bf16[64,32], index: 9, kind: input, shape index: {}]
  %s10 = inlined_call_operand.vmem [shape: f32[1,32], index: 10, kind: input, shape index: {}]
  %s11 = inlined_call_operand.vmem [shape: bf16[32,32], index: 11, kind: input, shape index: {}]
  %s12 = inlined_call_operand.vmem [shape: f32[1,32], index: 12, kind: input, shape index: {}]
  %s13 = inlined_call_operand.vmem [shape: bf16[32,32], index: 13, kind: input, shape index: {}]
  %s14 = inlined_call_operand.vmem [shape: f32[1,32], index: 14, kind: input, shape index: {}]
  %s15 = inlined_call_operand.vmem [shape: bf16[32,64], index: 15, kind: input, shape index: {}]
  %s16 = inlined_call_operand.vmem [shape: f32[1,64], index: 16, kind: input, shape index: {}]
  %s17 = inlined_call_operand.vmem [shape: bf16[64,32], index: 17, kind: input, shape index: {}]
  %s18 = inlined_call_operand.vmem [shape: f32[1,32], index: 18, kind: input, shape index: {}]
  %s19 = inlined_call_operand.vmem [shape: f32[2,1,64], index: 19, kind: output, shape index: {}]
  %s20 = sld [smem:[#allocation0]]
  $region109: #{caris_forward.3} parent=0
    _
  %s22 = ssub.s32 1, %s20
  %s23 = scalar_select 0, %s22, %s20
  loop: start=0, step=1, limit=4
  $region2: #{caris_forward.3} parent=0 // loop_pre_header
    _
  $region3: #{caris_forward.3} parent=0 // loop_header
    %s25 = sphi 0, %s29
    %p26 = scmp.ge.s32.totalorder %s25, 4
    %s32 = sphi 0, %s44
    %s33 = sphi 0, %s40
    %s34 = sphi 0, %s32
    %s35 = sphi 0, %s33
    %s36 = sphi 0, %s34
    %s37 = sphi 0, %s35
    %s49 = sphi 0, %s51
    %s52 = sphi 0, %s49
    %s53 = sphi 0, %s52
    %s69 = sphi 0, %s53
    %s75 = sphi 0, %s77
    %s78 = sphi 0, %s75
    %s79 = sphi 0, %s78
    %s95 = sphi 0, %s79
    %s101 = sphi 0, %s103
    %s104 = sphi 0, %s101
    %s105 = sphi 0, %s104
    %s121 = sphi 0, %s105
    %s127 = sphi 0, %s129
    %s130 = sphi 0, %s127
    %s131 = sphi 0, %s130
    %s147 = sphi 0, %s131
    %s153 = sphi 0, %s155
    %s156 = sphi 0, %s153
    %s157 = sphi 0, %s156
    %s173 = sphi 0, %s157
    %s177 = sphi 0, %s177
    %s179 = sphi 0, %s177
    %s180 = sphi 0, %s179
    %s194 = sphi 0, %s180
    %s198 = sphi 0, %s198
    %s200 = sphi 0, %s198
    %s201 = sphi 0, %s200
    %s215 = sphi 0, %s201
    %s219 = sphi 0, %s219
    %s221 = sphi 0, %s219
    %s222 = sphi 0, %s221
    %s236 = sphi 0, %s222
    %s240 = sphi 0, %s240
    %s242 = sphi 0, %s240
    %s243 = sphi 0, %s242
    %s257 = sphi 0, %s243
    %s261 = sphi 0, %s261
    %s263 = sphi 0, %s261
    %s264 = sphi 0, %s263
    %s278 = sphi 0, %s264
    %s282 = sphi 0, %s282
    %s284 = sphi 0, %s282
    %s285 = sphi 0, %s284
    %s299 = sphi 0, %s285
    %s303 = sphi 0, %s303
    %s305 = sphi 0, %s303
    %s306 = sphi 0, %s305
    %s320 = sphi 0, %s306
    %s324 = sphi 0, %s324
    %s326 = sphi 0, %s324
    %s327 = sphi 0, %s326
    %s341 = sphi 0, %s327
    %s345 = sphi 0, %s345
    %s347 = sphi 0, %s345
    %s348 = sphi 0, %s347
    %s362 = sphi 0, %s348
    %s366 = sphi 0, %s366
    %s368 = sphi 0, %s366
    %s369 = sphi 0, %s368
    %s383 = sphi 0, %s369
    %s387 = sphi 0, %s387
    %s389 = sphi 0, %s387
    %s390 = sphi 0, %s389
    %s404 = sphi 0, %s390
    %s408 = sphi 0, %s408
    %s410 = sphi 0, %s408
    %s411 = sphi 0, %s410
    %s425 = sphi 0, %s411
    %s429 = sphi 0, %s429
    %s431 = sphi 0, %s429
    %s432 = sphi 0, %s431
    %s446 = sphi 0, %s432
    %s450 = sphi 0, %s450
    %s452 = sphi 0, %s450
    %s453 = sphi 0, %s452
    %s467 = sphi 0, %s453
    %s475 = sphi 0, %s477
    %s478 = sphi 0, %s475
    %s479 = sphi 0, %s478
    %s495 = sphi 0, %s479
  $region4: #{caris_forward.3} parent=0 // loop_header_branch
    %28 = sbr.rel (%p26) target = $region8
  $region5: #{caris_forward.3} parent=0 // loop_body
    %s30 = ssub.s32 %s25, 1
    %s31 = ssub.s32 %s25, 2
    %s38 = sadd.s32 1, %s33
    %p39 = scmp.ge.s32.totalorder %s38, 1
    %s40 = scalar_select %p39, 0, %s38
    %s41 = sadd.s32 1, %s32
    %s42 = scalar_select %p39, %s41, %s32
    %p43 = scmp.ge.s32.totalorder %s42, 2
    %s44 = scalar_select %p43, 0, %s42
    %s45 = ssub.s32 %s32, %s44
    %s46 = ssub.s32 %s33, %s40
    %s47 = sor.u32 %s45, %s46
    %p48 = scmp.eq.s32.totalorder %s47, 0
    %s50 = sadd.s32 %s49, 1
    %s51 = scalar_select %p48, %s49, %s50
    %p54 = pneg %p48
    %p55 = scmp.eq.s32.totalorder %s25, 1
    %p56 = por %p54, %p55
    %p57 = scmp.ne.s32.totalorder %s49, %s52
    %p58 = scmp.eq.s32.totalorder %s25, 0
    %p59 = por %p57, %p58
    %p60 = scmp.ne.s32.totalorder %s49, %s52
    %p61 = scmp.eq.s32.totalorder %s30, 1
    %p62 = por %p60, %p61
    %p63 = scmp.ne.s32.totalorder %s52, %s53
    %p64 = scmp.eq.s32.totalorder %s30, 0
    %p65 = por %p63, %p64
    %p66 = scmp.ne.s32.totalorder %s52, %s53
    %p67 = scmp.eq.s32.totalorder %s31, 1
    %p68 = por %p66, %p67
    %p70 = scmp.ne.s32.totalorder %s53, %s69
    %p71 = scmp.eq.s32.totalorder %s31, 0
    %p72 = por %p70, %p71
    %s73 = ssub.s32 %s32, %s44
    %p74 = scmp.eq.s32.totalorder %s73, 0
    %s76 = sadd.s32 %s75, 1
    %s77 = scalar_select %p74, %s75, %s76
    %p80 = pneg %p74
    %p81 = scmp.eq.s32.totalorder %s25, 1
    %p82 = por %p80, %p81
    %p83 = scmp.ne.s32.totalorder %s75, %s78
    %p84 = scmp.eq.s32.totalorder %s25, 0
    %p85 = por %p83, %p84
    %p86 = scmp.ne.s32.totalorder %s75, %s78
    %p87 = scmp.eq.s32.totalorder %s30, 1
    %p88 = por %p86, %p87
    %p89 = scmp.ne.s32.totalorder %s78, %s79
    %p90 = scmp.eq.s32.totalorder %s30, 0
    %p91 = por %p89, %p90
    %p92 = scmp.ne.s32.totalorder %s78, %s79
    %p93 = scmp.eq.s32.totalorder %s31, 1
    %p94 = por %p92, %p93
    %p96 = scmp.ne.s32.totalorder %s79, %s95
    %p97 = scmp.eq.s32.totalorder %s31, 0
    %p98 = por %p96, %p97
    %s99 = ssub.s32 %s32, %s44
    %p100 = scmp.eq.s32.totalorder %s99, 0
    %s102 = sadd.s32 %s101, 1
    %s103 = scalar_select %p100, %s101, %s102
    %p106 = pneg %p100
    %p107 = scmp.eq.s32.totalorder %s25, 1
    %p108 = por %p106, %p107
    %p109 = scmp.ne.s32.totalorder %s101, %s104
    %p110 = scmp.eq.s32.totalorder %s25, 0
    %p111 = por %p109, %p110
    %p112 = scmp.ne.s32.totalorder %s101, %s104
    %p113 = scmp.eq.s32.totalorder %s30, 1
    %p114 = por %p112, %p113
    %p115 = scmp.ne.s32.totalorder %s104, %s105
    %p116 = scmp.eq.s32.totalorder %s30, 0
    %p117 = por %p115, %p116
    %p118 = scmp.ne.s32.totalorder %s104, %s105
    %p119 = scmp.eq.s32.totalorder %s31, 1
    %p120 = por %p118, %p119
    %p122 = scmp.ne.s32.totalorder %s105, %s121
    %p123 = scmp.eq.s32.totalorder %s31, 0
    %p124 = por %p122, %p123
    %s125 = ssub.s32 %s32, %s44
    %p126 = scmp.eq.s32.totalorder %s125, 0
    %s128 = sadd.s32 %s127, 1
    %s129 = scalar_select %p126, %s127, %s128
    %p132 = pneg %p126
    %p133 = scmp.eq.s32.totalorder %s25, 1
    %p134 = por %p132, %p133
    %p135 = scmp.ne.s32.totalorder %s127, %s130
    %p136 = scmp.eq.s32.totalorder %s25, 0
    %p137 = por %p135, %p136
    %p138 = scmp.ne.s32.totalorder %s127, %s130
    %p139 = scmp.eq.s32.totalorder %s30, 1
    %p140 = por %p138, %p139
    %p141 = scmp.ne.s32.totalorder %s130, %s131
    %p142 = scmp.eq.s32.totalorder %s30, 0
    %p143 = por %p141, %p142
    %p144 = scmp.ne.s32.totalorder %s130, %s131
    %p145 = scmp.eq.s32.totalorder %s31, 1
    %p146 = por %p144, %p145
    %p148 = scmp.ne.s32.totalorder %s131, %s147
    %p149 = scmp.eq.s32.totalorder %s31, 0
    %p150 = por %p148, %p149
    %s151 = ssub.s32 %s32, %s44
    %p152 = scmp.eq.s32.totalorder %s151, 0
    %s154 = sadd.s32 %s153, 1
    %s155 = scalar_select %p152, %s153, %s154
    %p158 = pneg %p152
    %p159 = scmp.eq.s32.totalorder %s25, 1
    %p160 = por %p158, %p159
    %p161 = scmp.ne.s32.totalorder %s153, %s156
    %p162 = scmp.eq.s32.totalorder %s25, 0
    %p163 = por %p161, %p162
    %p164 = scmp.ne.s32.totalorder %s153, %s156
    %p165 = scmp.eq.s32.totalorder %s30, 1
    %p166 = por %p164, %p165
    %p167 = scmp.ne.s32.totalorder %s156, %s157
    %p168 = scmp.eq.s32.totalorder %s30, 0
    %p169 = por %p167, %p168
    %p170 = scmp.ne.s32.totalorder %s156, %s157
    %p171 = scmp.eq.s32.totalorder %s31, 1
    %p172 = por %p170, %p171
    %p174 = scmp.ne.s32.totalorder %s157, %s173
    %p175 = scmp.eq.s32.totalorder %s31, 0
    %p176 = por %p174, %p175
    %s178 = sadd.s32 %s177, 1
    %p181 = scmp.eq.s32.totalorder %s25, 1
    %p182 = scmp.ne.s32.totalorder %s177, %s179
    %p183 = scmp.eq.s32.totalorder %s25, 0
    %p184 = por %p182, %p183
    %p185 = scmp.ne.s32.totalorder %s177, %s179
    %p186 = scmp.eq.s32.totalorder %s30, 1
    %p187 = por %p185, %p186
    %p188 = scmp.ne.s32.totalorder %s179, %s180
    %p189 = scmp.eq.s32.totalorder %s30, 0
    %p190 = por %p188, %p189
    %p191 = scmp.ne.s32.totalorder %s179, %s180
    %p192 = scmp.eq.s32.totalorder %s31, 1
    %p193 = por %p191, %p192
    %p195 = scmp.ne.s32.totalorder %s180, %s194
    %p196 = scmp.eq.s32.totalorder %s31, 0
    %p197 = por %p195, %p196
    %s199 = sadd.s32 %s198, 1
    %p202 = scmp.eq.s32.totalorder %s25, 1
    %p203 = scmp.ne.s32.totalorder %s198, %s200
    %p204 = scmp.eq.s32.totalorder %s25, 0
    %p205 = por %p203, %p204
    %p206 = scmp.ne.s32.totalorder %s198, %s200
    %p207 = scmp.eq.s32.totalorder %s30, 1
    %p208 = por %p206, %p207
    %p209 = scmp.ne.s32.totalorder %s200, %s201
    %p210 = scmp.eq.s32.totalorder %s30, 0
    %p211 = por %p209, %p210
    %p212 = scmp.ne.s32.totalorder %s200, %s201
    %p213 = scmp.eq.s32.totalorder %s31, 1
    %p214 = por %p212, %p213
    %p216 = scmp.ne.s32.totalorder %s201, %s215
    %p217 = scmp.eq.s32.totalorder %s31, 0
    %p218 = por %p216, %p217
    %s220 = sadd.s32 %s219, 1
    %p223 = scmp.eq.s32.totalorder %s25, 1
    %p224 = scmp.ne.s32.totalorder %s219, %s221
    %p225 = scmp.eq.s32.totalorder %s25, 0
    %p226 = por %p224, %p225
    %p227 = scmp.ne.s32.totalorder %s219, %s221
    %p228 = scmp.eq.s32.totalorder %s30, 1
    %p229 = por %p227, %p228
    %p230 = scmp.ne.s32.totalorder %s221, %s222
    %p231 = scmp.eq.s32.totalorder %s30, 0
    %p232 = por %p230, %p231
    %p233 = scmp.ne.s32.totalorder %s221, %s222
    %p234 = scmp.eq.s32.totalorder %s31, 1
    %p235 = por %p233, %p234
    %p237 = scmp.ne.s32.totalorder %s222, %s236
    %p238 = scmp.eq.s32.totalorder %s31, 0
    %p239 = por %p237, %p238
    %s241 = sadd.s32 %s240, 1
    %p244 = scmp.eq.s32.totalorder %s25, 1
    %p245 = scmp.ne.s32.totalorder %s240, %s242
    %p246 = scmp.eq.s32.totalorder %s25, 0
    %p247 = por %p245, %p246
    %p248 = scmp.ne.s32.totalorder %s240, %s242
    %p249 = scmp.eq.s32.totalorder %s30, 1
    %p250 = por %p248, %p249
    %p251 = scmp.ne.s32.totalorder %s242, %s243
    %p252 = scmp.eq.s32.totalorder %s30, 0
    %p253 = por %p251, %p252
    %p254 = scmp.ne.s32.totalorder %s242, %s243
    %p255 = scmp.eq.s32.totalorder %s31, 1
    %p256 = por %p254, %p255
    %p258 = scmp.ne.s32.totalorder %s243, %s257
    %p259 = scmp.eq.s32.totalorder %s31, 0
    %p260 = por %p258, %p259
    %s262 = sadd.s32 %s261, 1
    %p265 = scmp.eq.s32.totalorder %s25, 1
    %p266 = scmp.ne.s32.totalorder %s261, %s263
    %p267 = scmp.eq.s32.totalorder %s25, 0
    %p268 = por %p266, %p267
    %p269 = scmp.ne.s32.totalorder %s261, %s263
    %p270 = scmp.eq.s32.totalorder %s30, 1
    %p271 = por %p269, %p270
    %p272 = scmp.ne.s32.totalorder %s263, %s264
    %p273 = scmp.eq.s32.totalorder %s30, 0
    %p274 = por %p272, %p273
    %p275 = scmp.ne.s32.totalorder %s263, %s264
    %p276 = scmp.eq.s32.totalorder %s31, 1
    %p277 = por %p275, %p276
    %p279 = scmp.ne.s32.totalorder %s264, %s278
    %p280 = scmp.eq.s32.totalorder %s31, 0
    %p281 = por %p279, %p280
    %s283 = sadd.s32 %s282, 1
    %p286 = scmp.eq.s32.totalorder %s25, 1
    %p287 = scmp.ne.s32.totalorder %s282, %s284
    %p288 = scmp.eq.s32.totalorder %s25, 0
    %p289 = por %p287, %p288
    %p290 = scmp.ne.s32.totalorder %s282, %s284
    %p291 = scmp.eq.s32.totalorder %s30, 1
    %p292 = por %p290, %p291
    %p293 = scmp.ne.s32.totalorder %s284, %s285
    %p294 = scmp.eq.s32.totalorder %s30, 0
    %p295 = por %p293, %p294
    %p296 = scmp.ne.s32.totalorder %s284, %s285
    %p297 = scmp.eq.s32.totalorder %s31, 1
    %p298 = por %p296, %p297
    %p300 = scmp.ne.s32.totalorder %s285, %s299
    %p301 = scmp.eq.s32.totalorder %s31, 0
    %p302 = por %p300, %p301
    %s304 = sadd.s32 %s303, 1
    %p307 = scmp.eq.s32.totalorder %s25, 1
    %p308 = scmp.ne.s32.totalorder %s303, %s305
    %p309 = scmp.eq.s32.totalorder %s25, 0
    %p310 = por %p308, %p309
    %p311 = scmp.ne.s32.totalorder %s303, %s305
    %p312 = scmp.eq.s32.totalorder %s30, 1
    %p313 = por %p311, %p312
    %p314 = scmp.ne.s32.totalorder %s305, %s306
    %p315 = scmp.eq.s32.totalorder %s30, 0
    %p316 = por %p314, %p315
    %p317 = scmp.ne.s32.totalorder %s305, %s306
    %p318 = scmp.eq.s32.totalorder %s31, 1
    %p319 = por %p317, %p318
    %p321 = scmp.ne.s32.totalorder %s306, %s320
    %p322 = scmp.eq.s32.totalorder %s31, 0
    %p323 = por %p321, %p322
    %s325 = sadd.s32 %s324, 1
    %p328 = scmp.eq.s32.totalorder %s25, 1
    %p329 = scmp.ne.s32.totalorder %s324, %s326
    %p330 = scmp.eq.s32.totalorder %s25, 0
    %p331 = por %p329, %p330
    %p332 = scmp.ne.s32.totalorder %s324, %s326
    %p333 = scmp.eq.s32.totalorder %s30, 1
    %p334 = por %p332, %p333
    %p335 = scmp.ne.s32.totalorder %s326, %s327
    %p336 = scmp.eq.s32.totalorder %s30, 0
    %p337 = por %p335, %p336
    %p338 = scmp.ne.s32.totalorder %s326, %s327
    %p339 = scmp.eq.s32.totalorder %s31, 1
    %p340 = por %p338, %p339
    %p342 = scmp.ne.s32.totalorder %s327, %s341
    %p343 = scmp.eq.s32.totalorder %s31, 0
    %p344 = por %p342, %p343
    %s346 = sadd.s32 %s345, 1
    %p349 = scmp.eq.s32.totalorder %s25, 1
    %p350 = scmp.ne.s32.totalorder %s345, %s347
    %p351 = scmp.eq.s32.totalorder %s25, 0
    %p352 = por %p350, %p351
    %p353 = scmp.ne.s32.totalorder %s345, %s347
    %p354 = scmp.eq.s32.totalorder %s30, 1
    %p355 = por %p353, %p354
    %p356 = scmp.ne.s32.totalorder %s347, %s348
    %p357 = scmp.eq.s32.totalorder %s30, 0
    %p358 = por %p356, %p357
    %p359 = scmp.ne.s32.totalorder %s347, %s348
    %p360 = scmp.eq.s32.totalorder %s31, 1
    %p361 = por %p359, %p360
    %p363 = scmp.ne.s32.totalorder %s348, %s362
    %p364 = scmp.eq.s32.totalorder %s31, 0
    %p365 = por %p363, %p364
    %s367 = sadd.s32 %s366, 1
    %p370 = scmp.eq.s32.totalorder %s25, 1
    %p371 = scmp.ne.s32.totalorder %s366, %s368
    %p372 = scmp.eq.s32.totalorder %s25, 0
    %p373 = por %p371, %p372
    %p374 = scmp.ne.s32.totalorder %s366, %s368
    %p375 = scmp.eq.s32.totalorder %s30, 1
    %p376 = por %p374, %p375
    %p377 = scmp.ne.s32.totalorder %s368, %s369
    %p378 = scmp.eq.s32.totalorder %s30, 0
    %p379 = por %p377, %p378
    %p380 = scmp.ne.s32.totalorder %s368, %s369
    %p381 = scmp.eq.s32.totalorder %s31, 1
    %p382 = por %p380, %p381
    %p384 = scmp.ne.s32.totalorder %s369, %s383
    %p385 = scmp.eq.s32.totalorder %s31, 0
    %p386 = por %p384, %p385
    %s388 = sadd.s32 %s387, 1
    %p391 = scmp.eq.s32.totalorder %s25, 1
    %p392 = scmp.ne.s32.totalorder %s387, %s389
    %p393 = scmp.eq.s32.totalorder %s25, 0
    %p394 = por %p392, %p393
    %p395 = scmp.ne.s32.totalorder %s387, %s389
    %p396 = scmp.eq.s32.totalorder %s30, 1
    %p397 = por %p395, %p396
    %p398 = scmp.ne.s32.totalorder %s389, %s390
    %p399 = scmp.eq.s32.totalorder %s30, 0
    %p400 = por %p398, %p399
    %p401 = scmp.ne.s32.totalorder %s389, %s390
    %p402 = scmp.eq.s32.totalorder %s31, 1
    %p403 = por %p401, %p402
    %p405 = scmp.ne.s32.totalorder %s390, %s404
    %p406 = scmp.eq.s32.totalorder %s31, 0
    %p407 = por %p405, %p406
    %s409 = sadd.s32 %s408, 1
    %p412 = scmp.eq.s32.totalorder %s25, 1
    %p413 = scmp.ne.s32.totalorder %s408, %s410
    %p414 = scmp.eq.s32.totalorder %s25, 0
    %p415 = por %p413, %p414
    %p416 = scmp.ne.s32.totalorder %s408, %s410
    %p417 = scmp.eq.s32.totalorder %s30, 1
    %p418 = por %p416, %p417
    %p419 = scmp.ne.s32.totalorder %s410, %s411
    %p420 = scmp.eq.s32.totalorder %s30, 0
    %p421 = por %p419, %p420
    %p422 = scmp.ne.s32.totalorder %s410, %s411
    %p423 = scmp.eq.s32.totalorder %s31, 1
    %p424 = por %p422, %p423
    %p426 = scmp.ne.s32.totalorder %s411, %s425
    %p427 = scmp.eq.s32.totalorder %s31, 0
    %p428 = por %p426, %p427
    %s430 = sadd.s32 %s429, 1
    %p433 = scmp.eq.s32.totalorder %s25, 1
    %p434 = scmp.ne.s32.totalorder %s429, %s431
    %p435 = scmp.eq.s32.totalorder %s25, 0
    %p436 = por %p434, %p435
    %p437 = scmp.ne.s32.totalorder %s429, %s431
    %p438 = scmp.eq.s32.totalorder %s30, 1
    %p439 = por %p437, %p438
    %p440 = scmp.ne.s32.totalorder %s431, %s432
    %p441 = scmp.eq.s32.totalorder %s30, 0
    %p442 = por %p440, %p441
    %p443 = scmp.ne.s32.totalorder %s431, %s432
    %p444 = scmp.eq.s32.totalorder %s31, 1
    %p445 = por %p443, %p444
    %p447 = scmp.ne.s32.totalorder %s432, %s446
    %p448 = scmp.eq.s32.totalorder %s31, 0
    %p449 = por %p447, %p448
    %s451 = sadd.s32 %s450, 1
    %p454 = scmp.eq.s32.totalorder %s25, 1
    %p455 = scmp.ne.s32.totalorder %s450, %s452
    %p456 = scmp.eq.s32.totalorder %s25, 0
    %p457 = por %p455, %p456
    %p458 = scmp.ne.s32.totalorder %s450, %s452
    %p459 = scmp.eq.s32.totalorder %s30, 1
    %p460 = por %p458, %p459
    %p461 = scmp.ne.s32.totalorder %s452, %s453
    %p462 = scmp.eq.s32.totalorder %s30, 0
    %p463 = por %p461, %p462
    %p464 = scmp.ne.s32.totalorder %s452, %s453
    %p465 = scmp.eq.s32.totalorder %s31, 1
    %p466 = por %p464, %p465
    %p468 = scmp.ne.s32.totalorder %s453, %s467
    %p469 = scmp.eq.s32.totalorder %s31, 0
    %p470 = por %p468, %p469
    %s471 = ssub.s32 %s32, %s44
    %s472 = ssub.s32 %s33, %s40
    %s473 = sor.u32 %s471, %s472
    %p474 = scmp.eq.s32.totalorder %s473, 0
    %s476 = sadd.s32 %s475, 1
    %s477 = scalar_select %p474, %s475, %s476
    %p480 = pneg %p474
    %p481 = scmp.eq.s32.totalorder %s25, 1
    %p482 = por %p480, %p481
    %p483 = scmp.ne.s32.totalorder %s475, %s478
    %p484 = scmp.eq.s32.totalorder %s25, 0
    %p485 = por %p483, %p484
    %p486 = scmp.ne.s32.totalorder %s475, %s478
    %p487 = scmp.eq.s32.totalorder %s30, 1
    %p488 = por %p486, %p487
    %p489 = scmp.ne.s32.totalorder %s478, %s479
    %p490 = scmp.eq.s32.totalorder %s30, 0
    %p491 = por %p489, %p490
    %p492 = scmp.ne.s32.totalorder %s478, %s479
    %p493 = scmp.eq.s32.totalorder %s31, 1
    %p494 = por %p492, %p493
    %p496 = scmp.ne.s32.totalorder %s479, %s495
    %p497 = scmp.eq.s32.totalorder %s31, 0
    %p498 = por %p496, %p497
    %p499 = scmp.le.s32.totalorder 1, %s25
    %p500 = scmp.lt.s32.totalorder %s25, 3
    %p501 = pnand %p499, %p500
    %p502 = pneg %p501
    // Predicated region
    $region9: #{caris_forward.3} parent=5 // pred_check
      _
    $region10: #{caris_forward.3} parent=5 // pred_check_branch
      %504 = sbr.rel (%p501) target = $region12
    $region11: #{caris_forward.3} parent=5 // pred_region
      %s505 = ssub.s32 %s25, 1
      // Predicated region
      $region13: #{caris_forward.3} parent=11 // pred_check
        %p506 = pneg %p190
      $region14: #{caris_forward.3} parent=11 // pred_check_branch
        %508 = sbr.rel (%p506) target = $region16
      $region15: #{caris_forward.3} parent=11 // pred_region
        _
      $region16: #{caris_forward.3} parent=11 // pred_fallthru
        _
      // Predicated region
      $region17: #{caris_forward.3} parent=11 // pred_check
        %p509 = pneg %p211
      $region18: #{caris_forward.3} parent=11 // pred_check_branch
        %511 = sbr.rel (%p509) target = $region20
      $region19: #{caris_forward.3} parent=11 // pred_region
        _
      $region20: #{caris_forward.3} parent=11 // pred_fallthru
        _
      // Predicated region
      $region21: #{caris_forward.3} parent=11 // pred_check
        %p512 = pneg %p232
      $region22: #{caris_forward.3} parent=11 // pred_check_branch
        %514 = sbr.rel (%p512) target = $region24
      $region23: #{caris_forward.3} parent=11 // pred_region
        _
      $region24: #{caris_forward.3} parent=11 // pred_fallthru
        _
      // Predicated region
      $region25: #{caris_forward.3} parent=11 // pred_check
        %p515 = pneg %p253
      $region26: #{caris_forward.3} parent=11 // pred_check_branch
        %517 = sbr.rel (%p515) target = $region28
      $region27: #{caris_forward.3} parent=11 // pred_region
        _
      $region28: #{caris_forward.3} parent=11 // pred_fallthru
        _
      // Predicated region
      $region29: #{caris_forward.3} parent=11 // pred_check
        %p518 = pneg %p274
      $region30: #{caris_forward.3} parent=11 // pred_check_branch
        %520 = sbr.rel (%p518) target = $region32
      $region31: #{caris_forward.3} parent=11 // pred_region
        _
      $region32: #{caris_forward.3} parent=11 // pred_fallthru
        _
      // Predicated region
      $region33: #{caris_forward.3} parent=11 // pred_check
        %p521 = pneg %p295
      $region34: #{caris_forward.3} parent=11 // pred_check_branch
        %523 = sbr.rel (%p521) target = $region36
      $region35: #{caris_forward.3} parent=11 // pred_region
        _
      $region36: #{caris_forward.3} parent=11 // pred_fallthru
        _
      // Predicated region
      $region37: #{caris_forward.3} parent=11 // pred_check
        %p524 = pneg %p316
      $region38: #{caris_forward.3} parent=11 // pred_check_branch
        %526 = sbr.rel (%p524) target = $region40
      $region39: #{caris_forward.3} parent=11 // pred_region
        _
      $region40: #{caris_forward.3} parent=11 // pred_fallthru
        _
      // Predicated region
      $region41: #{caris_forward.3} parent=11 // pred_check
        %p527 = pneg %p337
      $region42: #{caris_forward.3} parent=11 // pred_check_branch
        %529 = sbr.rel (%p527) target = $region44
      $region43: #{caris_forward.3} parent=11 // pred_region
        _
      $region44: #{caris_forward.3} parent=11 // pred_fallthru
        _
      // Predicated region
      $region45: #{caris_forward.3} parent=11 // pred_check
        %p530 = pneg %p358
      $region46: #{caris_forward.3} parent=11 // pred_check_branch
        %532 = sbr.rel (%p530) target = $region48
      $region47: #{caris_forward.3} parent=11 // pred_region
        _
      $region48: #{caris_forward.3} parent=11 // pred_fallthru
        _
      // Predicated region
      $region49: #{caris_forward.3} parent=11 // pred_check
        %p533 = pneg %p379
      $region50: #{caris_forward.3} parent=11 // pred_check_branch
        %535 = sbr.rel (%p533) target = $region52
      $region51: #{caris_forward.3} parent=11 // pred_region
        _
      $region52: #{caris_forward.3} parent=11 // pred_fallthru
        _
      // Predicated region
      $region53: #{caris_forward.3} parent=11 // pred_check
        %p536 = pneg %p400
      $region54: #{caris_forward.3} parent=11 // pred_check_branch
        %538 = sbr.rel (%p536) target = $region56
      $region55: #{caris_forward.3} parent=11 // pred_region
        _
      $region56: #{caris_forward.3} parent=11 // pred_fallthru
        _
      // Predicated region
      $region57: #{caris_forward.3} parent=11 // pred_check
        %p539 = pneg %p421
      $region58: #{caris_forward.3} parent=11 // pred_check_branch
        %541 = sbr.rel (%p539) target = $region60
      $region59: #{caris_forward.3} parent=11 // pred_region
        _
      $region60: #{caris_forward.3} parent=11 // pred_fallthru
        _
      // Predicated region
      $region61: #{caris_forward.3} parent=11 // pred_check
        %p542 = pneg %p442
      $region62: #{caris_forward.3} parent=11 // pred_check_branch
        %544 = sbr.rel (%p542) target = $region64
      $region63: #{caris_forward.3} parent=11 // pred_region
        _
      $region64: #{caris_forward.3} parent=11 // pred_fallthru
        _
      // Predicated region
      $region65: #{caris_forward.3} parent=11 // pred_check
        %p545 = pneg %p463
      $region66: #{caris_forward.3} parent=11 // pred_check_branch
        %547 = sbr.rel (%p545) target = $region68
      $region67: #{caris_forward.3} parent=11 // pred_region
        _
      $region68: #{caris_forward.3} parent=11 // pred_fallthru
        _
    $region12: #{caris_forward.3} parent=5 // pred_fallthru
      _
    %p548 = scmp.lt.s32.totalorder %s25, 2
    // Predicated region
    $region69: #{caris_forward.3} parent=5 // pred_check
      %p549 = pneg %p548
    $region70: #{caris_forward.3} parent=5 // pred_check_branch
      %551 = sbr.rel (%p549) target = $region72
    $region71: #{caris_forward.3} parent=5 // pred_region
      // Predicated region
      $region73: #{caris_forward.3} parent=71 // pred_check
        %p552 = pneg %p59
      $region74: #{caris_forward.3} parent=71 // pred_check_branch
        %554 = sbr.rel (%p552) target = $region76
      $region75: #{caris_forward.3} parent=71 // pred_region
        %s555 = smul.u32 8, %s33
        %p556 = scmp.lt.s32.totalorder %s32, 1
        %s557 = scalar_select %p556, %s32, 1
        %p558 = scmp.lt.s32.totalorder %s555, 7
        %s559 = scalar_select %p558, %s555, 7
        %s560 = smul.addr %s557, 8
        %s561 = sadd.s32 %s559, %s560
        %s562 = smul.addr %s561, 4
        %s563 = scalar_lea.vmem %s0, %s562
        %s564 = smul.u32 8, %s33
      $region76: #{caris_forward.3} parent=71 // pred_fallthru
        _
      // Predicated region
      $region77: #{caris_forward.3} parent=71 // pred_check
        %p565 = pneg %p85
      $region78: #{caris_forward.3} parent=71 // pred_check_branch
        %567 = sbr.rel (%p565) target = $region80
      $region79: #{caris_forward.3} parent=71 // pred_region
        %p568 = scmp.lt.s32.totalorder %s32, 1
        %s569 = scalar_select %p568, %s32, 1
        %s570 = scalar_lea.vmem %s1, %s569
      $region80: #{caris_forward.3} parent=71 // pred_fallthru
        _
      // Predicated region
      $region81: #{caris_forward.3} parent=71 // pred_check
        %p571 = pneg %p111
      $region82: #{caris_forward.3} parent=71 // pred_check_branch
        %573 = sbr.rel (%p571) target = $region84
      $region83: #{caris_forward.3} parent=71 // pred_region
        %p574 = scmp.lt.s32.totalorder %s32, 1
        %s575 = scalar_select %p574, %s32, 1
        %s576 = smul.addr %s575, 4
        %s577 = scalar_lea.vmem %s2, %s576
      $region84: #{caris_forward.3} parent=71 // pred_fallthru
        _
      // Predicated region
      $region85: #{caris_forward.3} parent=71 // pred_check
        %p578 = pneg %p137
      $region86: #{caris_forward.3} parent=71 // pred_check_branch
        %580 = sbr.rel (%p578) target = $region88
      $region87: #{caris_forward.3} parent=71 // pred_region
        %p581 = scmp.lt.s32.totalorder %s32, 1
        %s582 = scalar_select %p581, %s32, 1
        %s583 = smul.addr %s582, 4
        %s584 = scalar_lea.vmem %s3, %s583
      $region88: #{caris_forward.3} parent=71 // pred_fallthru
        _
      // Predicated region
      $region89: #{caris_forward.3} parent=71 // pred_check
        %p585 = pneg %p163
      $region90: #{caris_forward.3} parent=71 // pred_check_branch
        %587 = sbr.rel (%p585) target = $region92
      $region91: #{caris_forward.3} parent=71 // pred_region
        %p588 = scmp.lt.s32.totalorder %s32, 1
        %s589 = scalar_select %p588, %s32, 1
        %s590 = scalar_lea.vmem %s4, %s589
      $region92: #{caris_forward.3} parent=71 // pred_fallthru
        _
    $region72: #{caris_forward.3} parent=5 // pred_fallthru
      _
    %p591 = scmp.le.s32.totalorder 1, %s25
    %p592 = scmp.lt.s32.totalorder %s25, 3
    %p593 = pnand %p591, %p592
    %p594 = pneg %p593
    // Predicated region
    $region93: #{caris_forward.3} parent=5 // pred_check
      _
    $region94: #{caris_forward.3} parent=5 // pred_check_branch
      %596 = sbr.rel (%p593) target = $region96
    $region95: #{caris_forward.3} parent=5 // pred_region
      %s597 = ssub.s32 %s25, 1
      %s598 = smul.u32 8, %s35
      %p599 = scmp.lt.s32.totalorder %s34, 1
      %s600 = scalar_select %p599, %s34, 1
      %p601 = scmp.lt.s32.totalorder %s598, 7
      %s602 = scalar_select %p601, %s598, 7
      %s603 = smul.addr %s600, 8
      %s604 = sadd.s32 %s602, %s603
      %s605 = smul.addr %s604, 4
      %s606 = scalar_lea.vmem %s0, %s605
      %p607 = pneg %p65
      %p608 = pneg %p62
      %p609 = scmp.lt.s32.totalorder %s34, 1
      %s610 = scalar_select %p609, %s34, 1
      %s611 = scalar_lea.vmem %s1, %s610
      %p612 = pneg %p91
      %p613 = pneg %p88
      %p614 = scmp.lt.s32.totalorder %s34, 1
      %s615 = scalar_select %p614, %s34, 1
      %s616 = smul.addr %s615, 4
      %s617 = scalar_lea.vmem %s2, %s616
      %p618 = pneg %p117
      %p619 = pneg %p114
      %p620 = scmp.lt.s32.totalorder %s34, 1
      %s621 = scalar_select %p620, %s34, 1
      %s622 = smul.addr %s621, 4
      %s623 = scalar_lea.vmem %s3, %s622
      %p624 = pneg %p143
      %p625 = pneg %p140
      %p626 = scmp.lt.s32.totalorder %s34, 1
      %s627 = scalar_select %p626, %s34, 1
      %s628 = scalar_lea.vmem %s4, %s627
      %p629 = pneg %p169
      %p630 = pneg %p166
      %p631 = pneg %p190
      %p632 = pneg %p187
      %p633 = pneg %p211
      %p634 = pneg %p208
      %p635 = pneg %p232
      %p636 = pneg %p229
      %p637 = pneg %p253
      %p638 = pneg %p250
      %p639 = pneg %p274
      %p640 = pneg %p271
      %p641 = pneg %p295
      %p642 = pneg %p292
      %p643 = pneg %p316
      %p644 = pneg %p313
      %p645 = pneg %p337
      %p646 = pneg %p334
      %p647 = pneg %p358
      %p648 = pneg %p355
      %p649 = pneg %p379
      %p650 = pneg %p376
      %p651 = pneg %p400
      %p652 = pneg %p397
      %p653 = pneg %p421
      %p654 = pneg %p418
      %p655 = pneg %p442
      %p656 = pneg %p439
      %p657 = pneg %p463
      %p658 = pneg %p460
      %p659 = pneg %p491
      %p660 = pneg %p488
      %p661 = scmp.lt.s32.totalorder %s34, 1
      %s662 = scalar_select %p661, %s34, 1
      %p663 = scmp.lt.s32.totalorder %s35, 0
      %s664 = scalar_select %p663, %s35, 0
      %s665 = sadd.s32 %s664, %s662
      %s666 = scalar_lea.vmem %s19, %s665
      %s667 = smul.u32 8, %s35
      %p668 = scmp.lt.s32.totalorder %s34, 1
      %s669 = scalar_select %p668, %s34, 1
      %p670 = scmp.lt.s32.totalorder %s667, 7
      %s671 = scalar_select %p670, %s667, 7
      %s672 = smul.addr %s669, 8
      %s673 = sadd.s32 %s671, %s672
      %s674 = smul.addr %s673, 4
      %s675 = scalar_lea.vmem %s0, %s674
      %s676 = smul.u32 8, %s35
      %p677 = scmp.lt.s32.totalorder %s34, 1
      %s678 = scalar_select %p677, %s34, 1
      %s679 = scalar_lea.vmem %s1, %s678
      %p680 = scmp.lt.s32.totalorder %s34, 1
      %s681 = scalar_select %p680, %s34, 1
      %s682 = smul.addr %s681, 4
      %s683 = scalar_lea.vmem %s2, %s682
      %p684 = scmp.lt.s32.totalorder %s34, 1
      %s685 = scalar_select %p684, %s34, 1
      %s686 = smul.addr %s685, 4
      %s687 = scalar_lea.vmem %s3, %s686
      %p688 = scmp.lt.s32.totalorder %s34, 1
      %s689 = scalar_select %p688, %s34, 1
      %s690 = scalar_lea.vmem %s4, %s689
      %p691 = scmp.lt.s32.totalorder %s34, 1
      %s692 = scalar_select %p691, %s34, 1
      %p693 = scmp.lt.s32.totalorder %s35, 0
      %s694 = scalar_select %p693, %s35, 0
      %s695 = sadd.s32 %s694, %s692
      %s696 = scalar_lea.vmem %s19, %s695
      %v698 = vld [vmem:[%s675] sm:$0xf]
      %v699 = vld [vmem:[%s675 + $0x4] sm:$0xf]
      %v700 = vld [vmem:[%s675 + $0x8] sm:$0xf]
      %v701 = vld [vmem:[%s675 + $0xc] sm:$0xf]
      %v702 = vld [vmem:[%s675 + $0x10] sm:$0xf]
      %v703 = vld [vmem:[%s675 + $0x14] sm:$0xf]
      %v704 = vld [vmem:[%s675 + $0x18] sm:$0xf]
      %v705 = vld [vmem:[%s675 + $0x1c] sm:$0xf]
      %v706 = vld [vmem:[%s5] sm:$0xf]
      %v707 = vld [vmem:[%s5 + $0x4] sm:$0x3]
      %v708 = vld [vmem:[%s6] sm:$0x1]
      %v710 = vlaneseq
      %v711 = vshrl.u32 %v710, 7
      %v712 = vsub.s32 0, %v711
      %v713 = vrot.slane %v708, %v712
      %v723 = vunpack.c.l.b16 %v698
      %v724 = vunpack.c.l.b16 %v699
      %v725 = vunpack.c.l.b16 %v700
      %v726 = vunpack.c.l.b16 %v701
      %v727 = vunpack.c.l.b16 %v702
      %v728 = vunpack.c.l.b16 %v703
      %v729 = vunpack.c.l.b16 %v704
      %v730 = vunpack.c.l.b16 %v705
      %v731 = vpack.c.b16 %v724, %v723
      %v732 = vpack.c.b16 %v726, %v725
      %v733 = vpack.c.b16 %v728, %v727
      %v734 = vpack.c.b16 %v730, %v729
      %v737 = vunpack.c.l.b16 %v706
      %v738 = vunpack.c.l.b16 %v707
      %v739 = vpack.c.b16 %v738, %v737
      %vm740 = vcmask 97280
      %v742 = vsel %vm740, %v731, 0
      %v745 = vsel %vm740, %v732, 0
      %v748 = vsel %vm740, %v733, 0
      %v751 = vsel %vm740, %v734, 0
      %vm753 = vcmask 1045504
      %v755 = vsel %vm753, %v739, 0
      %757 = vmatprep.subr.bf16.mxu0 0
      %758 = vmatpush1.bf16.msra.mxu0 %v755
      %759 = vmatprep.subr.bf16.mxu0 0
      %760 = vmatpush1.bf16.msra.mxu0 0
      %761 = vmatprep.subr.bf16.mxu0 0
      %762 = vmatpush1.bf16.msra.mxu0 0
      %763 = vmatprep.subr.bf16.mxu0 0
      %764 = vmatpush1.bf16.msra.mxu0 0
      %765 = vmatprep.subr.bf16.mxu0 0
      %766 = vmatpush1.bf16.msra.mxu0 0
      %767 = vmatprep.subr.bf16.mxu0 0
      %768 = vmatpush1.bf16.msra.mxu0 0
      %769 = vmatprep.subr.bf16.mxu0 0
      %770 = vmatpush1.bf16.msra.mxu0 0
      %771 = vmatprep.subr.bf16.mxu0 0
      %772 = vmatpush1.bf16.msra.mxu0 0
      %773 = vmatprep.subr.bf16.mxu0 0
      %774 = vmatpush1.bf16.msra.mxu0 0
      %775 = vmatprep.subr.bf16.mxu0 0
      %776 = vmatpush1.bf16.msra.mxu0 0
      %777 = vmatprep.subr.bf16.mxu0 0
      %778 = vmatpush1.bf16.msra.mxu0 0
      %779 = vmatprep.subr.bf16.mxu0 0
      %780 = vmatpush1.bf16.msra.mxu0 0
      %781 = vmatprep.subr.bf16.mxu0 0
      %782 = vmatpush1.bf16.msra.mxu0 0
      %783 = vmatprep.subr.bf16.mxu0 0
      %784 = vmatpush1.bf16.msra.mxu0 0
      %785 = vmatprep.subr.bf16.mxu0 0
      %786 = vmatpush1.bf16.msra.mxu0 0
      %787 = vmatprep.subr.bf16.mxu0 0
      %788 = vmatpush1.bf16.msra.mxu0 0
      %789 = vmatprep.mubr.bf16.mxu0 0
      %790 = vmatmul.mubr.bf16.gmra.mrb[0].mxu0 %v742
      %v791 = vpop.f32.mrb[0].mxu0
      %v792 = vadd.f32 %v713, %v791
      %v793 = vpop.f32.mrb[0].mxu0
      %v794 = vpop.f32.mrb[0].mxu0
      %v795 = vadd.f32 %v713, %v794
      %v796 = vpop.f32.mrb[0].mxu0
      %797 = vmatprep.mubr.bf16.mxu0 0
      %798 = vmatmul.mubr.bf16.gmra.mrb[0].mxu0 %v745
      %v799 = vpop.f32.mrb[0].mxu0
      %v800 = vadd.f32 %v713, %v799
      %v801 = vpop.f32.mrb[0].mxu0
      %v802 = vpop.f32.mrb[0].mxu0
      %v803 = vadd.f32 %v713, %v802
      %v804 = vpop.f32.mrb[0].mxu0
      %805 = vmatprep.mubr.bf16.mxu0 0
      %806 = vmatmul.mubr.bf16.gmra.mrb[0].mxu0 %v748
      %v807 = vpop.f32.mrb[0].mxu0
      %v808 = vadd.f32 %v713, %v807
      %v809 = vpop.f32.mrb[0].mxu0
      %v810 = vpop.f32.mrb[0].mxu0
      %v811 = vadd.f32 %v713, %v810
      %v812 = vpop.f32.mrb[0].mxu0
      %813 = vmatprep.mubr.bf16.mxu0 0
      %814 = vmatmul.mubr.bf16.gmra.mrb[0].mxu0 %v751
      %v815 = vpop.f32.mrb[0].mxu0
      %v816 = vadd.f32 %v713, %v815
      %v817 = vpop.f32.mrb[0].mxu0
      %v818 = vpop.f32.mrb[0].mxu0
      %v819 = vadd.f32 %v713, %v818
      %v820 = vpop.f32.mrb[0].mxu0
      %821 = vdwg.mxu0
      %v822 = vpack.c.bf16 %v795, %v792
      %v823 = vpack.c.bf16 %v803, %v800
      %v824 = vpack.c.bf16 %v811, %v808
      %v825 = vpack.c.bf16 %v819, %v816
      %v826 = vld [vmem:[%s7] sm:$0xf]
      %v827 = vld [vmem:[%s7 + $0x4] sm:$0xf]
      %v828 = vld [vmem:[%s7 + $0x8] sm:$0xf]
      %v829 = vld [vmem:[%s7 + $0xc] sm:$0xf]
      %v830 = vld [vmem:[%s8] sm:$0x1]
      %v832 = vlaneseq
      %v833 = vshrl.u32 %v832, 7
      %v834 = vsub.s32 0, %v833
      %v835 = vrot.slane %v830, %v834
      %v841 = vunpack.c.l.b16 %v826
      %v842 = vunpack.c.l.b16 %v827
      %v843 = vunpack.c.l.b16 %v828
      %v844 = vunpack.c.l.b16 %v829
      %v845 = vpack.c.b16 %v842, %v841
      %v846 = vpack.c.b16 %v844, %v843
      %vm849 = vcmask 261120
      %v851 = vsel %vm849, %v822, 0
      %v854 = vsel %vm849, %v823, 0
      %v857 = vsel %vm849, %v824, 0
      %v860 = vsel %vm849, %v825, 0
      %862 = vmatprep.subr.bf16.mxu0 0
      %863 = vmatpush1.bf16.msra.mxu0 %v845
      %864 = vmatprep.subr.bf16.mxu0 0
      %865 = vmatpush1.bf16.msra.mxu0 %v846
      %866 = vmatprep.subr.bf16.mxu0 0
      %867 = vmatpush1.bf16.msra.mxu0 0
      %868 = vmatprep.subr.bf16.mxu0 0
      %869 = vmatpush1.bf16.msra.mxu0 0
      %870 = vmatprep.subr.bf16.mxu0 0
      %871 = vmatpush1.bf16.msra.mxu0 0
      %872 = vmatprep.subr.bf16.mxu0 0
      %873 = vmatpush1.bf16.msra.mxu0 0
      %874 = vmatprep.subr.bf16.mxu0 0
      %875 = vmatpush1.bf16.msra.mxu0 0
      %876 = vmatprep.subr.bf16.mxu0 0
      %877 = vmatpush1.bf16.msra.mxu0 0
      %878 = vmatprep.subr.bf16.mxu0 0
      %879 = vmatpush1.bf16.msra.mxu0 0
      %880 = vmatprep.subr.bf16.mxu0 0
      %881 = vmatpush1.bf16.msra.mxu0 0
      %882 = vmatprep.subr.bf16.mxu0 0
      %883 = vmatpush1.bf16.msra.mxu0 0
      %884 = vmatprep.subr.bf16.mxu0 0
      %885 = vmatpush1.bf16.msra.mxu0 0
      %886 = vmatprep.subr.bf16.mxu0 0
      %887 = vmatpush1.bf16.msra.mxu0 0
      %888 = vmatprep.subr.bf16.mxu0 0
      %889 = vmatpush1.bf16.msra.mxu0 0
      %890 = vmatprep.subr.bf16.mxu0 0
      %891 = vmatpush1.bf16.msra.mxu0 0
      %892 = vmatprep.subr.bf16.mxu0 0
      %893 = vmatpush1.bf16.msra.mxu0 0
      %894 = vmatprep.mubr.bf16.mxu0 0
      %895 = vmatmul.mubr.bf16.gmra.mrb[0].mxu0 %v851
      %v896 = vpop.f32.mrb[0].mxu0
      %v897 = vadd.f32 %v835, %v896
      %v898 = vpop.f32.mrb[0].mxu0
      %v899 = vpop.f32.mrb[0].mxu0
      %v900 = vadd.f32 %v835, %v899
      %v901 = vpop.f32.mrb[0].mxu0
      %902 = vmatprep.mubr.bf16.mxu0 0
      %903 = vmatmul.mubr.bf16.gmra.mrb[0].mxu0 %v854
      %v904 = vpop.f32.mrb[0].mxu0
      %v905 = vadd.f32 %v835, %v904
      %v906 = vpop.f32.mrb[0].mxu0
      %v907 = vpop.f32.mrb[0].mxu0
      %v908 = vadd.f32 %v835, %v907
      %v909 = vpop.f32.mrb[0].mxu0
      %910 = vmatprep.mubr.bf16.mxu0 0
      %911 = vmatmul.mubr.bf16.gmra.mrb[0].mxu0 %v857
      %v912 = vpop.f32.mrb[0].mxu0
      %v913 = vadd.f32 %v835, %v912
      %v914 = vpop.f32.mrb[0].mxu0
      %v915 = vpop.f32.mrb[0].mxu0
      %v916 = vadd.f32 %v835, %v915
      %v917 = vpop.f32.mrb[0].mxu0
      %918 = vmatprep.mubr.bf16.mxu0 0
      %919 = vmatmul.mubr.bf16.gmra.mrb[0].mxu0 %v860
      %v920 = vpop.f32.mrb[0].mxu0
      %v921 = vadd.f32 %v835, %v920
      %v922 = vpop.f32.mrb[0].mxu0
      %v923 = vpop.f32.mrb[0].mxu0
      %v924 = vadd.f32 %v835, %v923
      %v925 = vpop.f32.mrb[0].mxu0
      %926 = vdwg.mxu0
      %v927 = vmul.f32 %v897, %v897
      %v928 = vmul.f32 %v900, %v900
      %v929 = vmul.f32 %v905, %v905
      %v930 = vmul.f32 %v908, %v908
      %v931 = vmul.f32 %v913, %v913
      %v932 = vmul.f32 %v916, %v916
      %v933 = vmul.f32 %v921, %v921
      %v934 = vmul.f32 %v924, %v924
      %v935 = vmul.f32 %v897, %v927
      %v936 = vmul.f32 %v900, %v928
      %v937 = vmul.f32 %v905, %v929
      %v938 = vmul.f32 %v908, %v930
      %v939 = vmul.f32 %v913, %v931
      %v940 = vmul.f32 %v916, %v932
      %v941 = vmul.f32 %v921, %v933
      %v942 = vmul.f32 %v924, %v934
      %v943 = vmul.f32 %v935, 0.044715
      %v944 = vmul.f32 %v936, 0.044715
      %v945 = vmul.f32 %v937, 0.044715
      %v946 = vmul.f32 %v938, 0.044715
      %v947 = vmul.f32 %v939, 0.044715
      %v948 = vmul.f32 %v940, 0.044715
      %v949 = vmul.f32 %v941, 0.044715
      %v950 = vmul.f32 %v942, 0.044715
      %v951 = vadd.f32 %v897, %v943
      %v952 = vadd.f32 %v900, %v944
      %v953 = vadd.f32 %v905, %v945
      %v954 = vadd.f32 %v908, %v946
      %v955 = vadd.f32 %v913, %v947
      %v956 = vadd.f32 %v916, %v948
      %v957 = vadd.f32 %v921, %v949
      %v958 = vadd.f32 %v924, %v950
      %v959 = vmul.f32 %v951, 0.7978846
      %v960 = vmul.f32 %v952, 0.7978846
      %v961 = vmul.f32 %v953, 0.7978846
      %v962 = vmul.f32 %v954, 0.7978846
      %v963 = vmul.f32 %v955, 0.7978846
      %v964 = vmul.f32 %v956, 0.7978846
      %v965 = vmul.f32 %v957, 0.7978846
      %v966 = vmul.f32 %v958, 0.7978846
      %v967 = vtanh.pop %v959
      %v968 = vtanh.pop %v960
      %v969 = vtanh.pop %v961
      %v970 = vtanh.pop %v962
      %v971 = vtanh.pop %v963
      %v972 = vtanh.pop %v964
      %v973 = vtanh.pop %v965
      %v974 = vtanh.pop %v966
      %v975 = vadd.f32 %v967, 1.0
      %v976 = vadd.f32 %v968, 1.0
      %v977 = vadd.f32 %v969, 1.0
      %v978 = vadd.f32 %v970, 1.0
      %v979 = vadd.f32 %v971, 1.0
      %v980 = vadd.f32 %v972, 1.0
      %v981 = vadd.f32 %v973, 1.0
      %v982 = vadd.f32 %v974, 1.0
      %v983 = vmul.f32 %v975, 0.5
      %v984 = vmul.f32 %v976, 0.5
      %v985 = vmul.f32 %v977, 0.5
      %v986 = vmul.f32 %v978, 0.5
      %v987 = vmul.f32 %v979, 0.5
      %v988 = vmul.f32 %v980, 0.5
      %v989 = vmul.f32 %v981, 0.5
      %v990 = vmul.f32 %v982, 0.5
      %v991 = vmul.f32 %v897, %v983
      %v992 = vmul.f32 %v900, %v984
      %v993 = vmul.f32 %v905, %v985
      %v994 = vmul.f32 %v908, %v986
      %v995 = vmul.f32 %v913, %v987
      %v996 = vmul.f32 %v916, %v988
      %v997 = vmul.f32 %v921, %v989
      %v998 = vmul.f32 %v924, %v990
      %v999 = vpack.c.bf16 %v992, %v991
      %v1000 = vpack.c.bf16 %v994, %v993
      %v1001 = vpack.c.bf16 %v996, %v995
      %v1002 = vpack.c.bf16 %v998, %v997
      %v1003 = vld [vmem:[%s9] sm:$0xf]
      %v1004 = vld [vmem:[%s9 + $0x4] sm:$0xf]
      %v1005 = vld [vmem:[%s9 + $0x8] sm:$0xf]
      %v1006 = vld [vmem:[%s9 + $0xc] sm:$0xf]
      %v1007 = vld [vmem:[%s9 + $0x10] sm:$0xf]
      %v1008 = vld [vmem:[%s9 + $0x14] sm:$0xf]
      %v1009 = vld [vmem:[%s9 + $0x18] sm:$0xf]
      %v1010 = vld [vmem:[%s9 + $0x1c] sm:$0xf]
      %v1019 = vunpack.c.l.b16 %v1003
      %v1020 = vunpack.c.l.b16 %v1004
      %v1021 = vunpack.c.l.b16 %v1005
      %v1022 = vunpack.c.l.b16 %v1006
      %v1023 = vunpack.c.l.b16 %v1007
      %v1024 = vunpack.c.l.b16 %v1008
      %v1025 = vunpack.c.l.b16 %v1009
      %v1026 = vunpack.c.l.b16 %v1010
      %v1027 = vpack.c.b16 %v1020, %v1019
      %v1028 = vpack.c.b16 %v1022, %v1021
      %v1029 = vpack.c.b16 %v1024, %v1023
      %v1030 = vpack.c.b16 %v1026, %v1025
      %vm1035 = vcmask 523264
      %v1037 = vsel %vm1035, %v999, 0
      %v1040 = vsel %vm1035, %v1000, 0
      %v1043 = vsel %vm1035, %v1001, 0
      %v1046 = vsel %vm1035, %v1002, 0
      %1048 = vmatprep.subr.bf16.mxu0 0
      %1049 = vmatpush1.bf16.msra.mxu0 %v1027
      %1050 = vmatprep.subr.bf16.mxu0 0
      %1051 = vmatpush1.bf16.msra.mxu0 %v1028
      %1052 = vmatprep.subr.bf16.mxu0 0
      %1053 = vmatpush1.bf16.msra.mxu0 %v1029
      %1054 = vmatprep.subr.bf16.mxu0 0
      %1055 = vmatpush1.bf16.msra.mxu0 %v1030
      %1056 = vmatprep.subr.bf16.mxu0 0
      %1057 = vmatpush1.bf16.msra.mxu0 0
      %1058 = vmatprep.subr.bf16.mxu0 0
      %1059 = vmatpush1.bf16.msra.mxu0 0
      %1060 = vmatprep.subr.bf16.mxu0 0
      %1061 = vmatpush1.bf16.msra.mxu0 0
      %1062 = vmatprep.subr.bf16.mxu0 0
      %1063 = vmatpush1.bf16.msra.mxu0 0
      %1064 = vmatprep.subr.bf16.mxu0 0
      %1065 = vmatpush1.bf16.msra.mxu0 0
      %1066 = vmatprep.subr.bf16.mxu0 0
      %1067 = vmatpush1.bf16.msra.mxu0 0
      %1068 = vmatprep.subr.bf16.mxu0 0
      %1069 = vmatpush1.bf16.msra.mxu0 0
      %1070 = vmatprep.subr.bf16.mxu0 0
      %1071 = vmatpush1.bf16.msra.mxu0 0
      %1072 = vmatprep.subr.bf16.mxu0 0
      %1073 = vmatpush1.bf16.msra.mxu0 0
      %1074 = vmatprep.subr.bf16.mxu0 0
      %1075 = vmatpush1.bf16.msra.mxu0 0
      %1076 = vmatprep.subr.bf16.mxu0 0
      %1077 = vmatpush1.bf16.msra.mxu0 0
      %1078 = vmatprep.subr.bf16.mxu0 0
      %1079 = vmatpush1.bf16.msra.mxu0 0
      %1080 = vmatprep.mubr.bf16.mxu0 0
      %1081 = vmatmul.mubr.bf16.gmra.mrb[0].mxu0 %v1037
      %v1082 = vpop.f32.mrb[0].mxu0
      %v1083 = vadd.f32 0.0, %v1082
      %v1084 = vpop.f32.mrb[0].mxu0
      %v1085 = vpop.f32.mrb[0].mxu0
      %v1086 = vadd.f32 0.0, %v1085
      %v1087 = vpop.f32.mrb[0].mxu0
      %1088 = vmatprep.mubr.bf16.mxu0 0
      %1089 = vmatmul.mubr.bf16.gmra.mrb[0].mxu0 %v1040
      %v1090 = vpop.f32.mrb[0].mxu0
      %v1091 = vadd.f32 0.0, %v1090
      %v1092 = vpop.f32.mrb[0].mxu0
      %v1093 = vpop.f32.mrb[0].mxu0
      %v1094 = vadd.f32 0.0, %v1093
      %v1095 = vpop.f32.mrb[0].mxu0
      %1096 = vmatprep.mubr.bf16.mxu0 0
      %1097 = vmatmul.mubr.bf16.gmra.mrb[0].mxu0 %v1043
      %v1098 = vpop.f32.mrb[0].mxu0
      %v1099 = vadd.f32 0.0, %v1098
      %v1100 = vpop.f32.mrb[0].mxu0
      %v1101 = vpop.f32.mrb[0].mxu0
      %v1102 = vadd.f32 0.0, %v1101
      %v1103 = vpop.f32.mrb[0].mxu0
      %1104 = vmatprep.mubr.bf16.mxu0 0
      %1105 = vmatmul.mubr.bf16.gmra.mrb[0].mxu0 %v1046
      %v1106 = vpop.f32.mrb[0].mxu0
      %v1107 = vadd.f32 0.0, %v1106
      %v1108 = vpop.f32.mrb[0].mxu0
      %v1109 = vpop.f32.mrb[0].mxu0
      %v1110 = vadd.f32 0.0, %v1109
      %v1111 = vpop.f32.mrb[0].mxu0
      %1112 = vdwg.mxu0
      %v1113 = vadd.f32 %v792, %v1083
      %v1114 = vadd.f32 %v795, %v1086
      %v1115 = vadd.f32 %v800, %v1091
      %v1116 = vadd.f32 %v803, %v1094
      %v1117 = vadd.f32 %v808, %v1099
      %v1118 = vadd.f32 %v811, %v1102
      %v1119 = vadd.f32 %v816, %v1107
      %v1120 = vadd.f32 %v819, %v1110
      %v1121 = vld [vmem:[%s10] sm:$0x1]
      %v1123 = vlaneseq
      %v1124 = vshrl.u32 %v1123, 7
      %v1125 = vsub.s32 0, %v1124
      %v1126 = vrot.slane %v1121, %v1125
      %v1128 = vadd.f32 %v1113, %v1126
      %v1129 = vadd.f32 %v1114, %v1126
      %v1130 = vadd.f32 %v1115, %v1126
      %v1131 = vadd.f32 %v1116, %v1126
      %v1132 = vadd.f32 %v1117, %v1126
      %v1133 = vadd.f32 %v1118, %v1126
      %v1134 = vadd.f32 %v1119, %v1126
      %v1135 = vadd.f32 %v1120, %v1126
      %v1136 = vpack.c.bf16 %v1129, %v1128
      %v1137 = vpack.c.bf16 %v1131, %v1130
      %v1138 = vpack.c.bf16 %v1133, %v1132
      %v1139 = vpack.c.bf16 %v1135, %v1134
      %v1140 = vld [vmem:[%s11] sm:$0xf]
      %v1141 = vld [vmem:[%s11 + $0x4] sm:$0xf]
      %v1142 = vld [vmem:[%s11 + $0x8] sm:$0xf]
      %v1143 = vld [vmem:[%s11 + $0xc] sm:$0xf]
      %v1144 = vld [vmem:[%s12] sm:$0x1]
      %v1146 = vlaneseq
      %v1147 = vshrl.u32 %v1146, 7
      %v1148 = vsub.s32 0, %v1147
      %v1149 = vrot.slane %v1144, %v1148
      %v1155 = vunpack.c.l.b16 %v1140
      %v1156 = vunpack.c.l.b16 %v1141
      %v1157 = vunpack.c.l.b16 %v1142
      %v1158 = vunpack.c.l.b16 %v1143
      %v1159 = vpack.c.b16 %v1156, %v1155
      %v1160 = vpack.c.b16 %v1158, %v1157
      %v1164 = vsel %vm849, %v1136, 0
      %v1167 = vsel %vm849, %v1137, 0
      %v1170 = vsel %vm849, %v1138, 0
      %v1173 = vsel %vm849, %v1139, 0
      %1175 = vmatprep.subr.bf16.mxu0 0
      %1176 = vmatpush1.bf16.msra.mxu0 %v1159
      %1177 = vmatprep.subr.bf16.mxu0 0
      %1178 = vmatpush1.bf16.msra.mxu0 %v1160
      %1179 = vmatprep.subr.bf16.mxu0 0
      %1180 = vmatpush1.bf16.msra.mxu0 0
      %1181 = vmatprep.subr.bf16.mxu0 0
      %1182 = vmatpush1.bf16.msra.mxu0 0
      %1183 = vmatprep.subr.bf16.mxu0 0
      %1184 = vmatpush1.bf16.msra.mxu0 0
      %1185 = vmatprep.subr.bf16.mxu0 0
      %1186 = vmatpush1.bf16.msra.mxu0 0
      %1187 = vmatprep.subr.bf16.mxu0 0
      %1188 = vmatpush1.bf16.msra.mxu0 0
      %1189 = vmatprep.subr.bf16.mxu0 0
      %1190 = vmatpush1.bf16.msra.mxu0 0
      %1191 = vmatprep.subr.bf16.mxu0 0
      %1192 = vmatpush1.bf16.msra.mxu0 0
      %1193 = vmatprep.subr.bf16.mxu0 0
      %1194 = vmatpush1.bf16.msra.mxu0 0
      %1195 = vmatprep.subr.bf16.mxu0 0
      %1196 = vmatpush1.bf16.msra.mxu0 0
      %1197 = vmatprep.subr.bf16.mxu0 0
      %1198 = vmatpush1.bf16.msra.mxu0 0
      %1199 = vmatprep.subr.bf16.mxu0 0
      %1200 = vmatpush1.bf16.msra.mxu0 0
      %1201 = vmatprep.subr.bf16.mxu0 0
      %1202 = vmatpush1.bf16.msra.mxu0 0
      %1203 = vmatprep.subr.bf16.mxu0 0
      %1204 = vmatpush1.bf16.msra.mxu0 0
      %1205 = vmatprep.subr.bf16.mxu0 0
      %1206 = vmatpush1.bf16.msra.mxu0 0
      %1207 = vmatprep.mubr.bf16.mxu0 0
      %1208 = vmatmul.mubr.bf16.gmra.mrb[0].mxu0 %v1164
      %v1209 = vpop.f32.mrb[0].mxu0
      %v1210 = vadd.f32 %v1149, %v1209
      %v1211 = vpop.f32.mrb[0].mxu0
      %v1212 = vpop.f32.mrb[0].mxu0
      %v1213 = vadd.f32 %v1149, %v1212
      %v1214 = vpop.f32.mrb[0].mxu0
      %1215 = vmatprep.mubr.bf16.mxu0 0
      %1216 = vmatmul.mubr.bf16.gmra.mrb[0].mxu0 %v1167
      %v1217 = vpop.f32.mrb[0].mxu0
      %v1218 = vadd.f32 %v1149, %v1217
      %v1219 = vpop.f32.mrb[0].mxu0
      %v1220 = vpop.f32.mrb[0].mxu0
      %v1221 = vadd.f32 %v1149, %v1220
      %v1222 = vpop.f32.mrb[0].mxu0
      %1223 = vmatprep.mubr.bf16.mxu0 0
      %1224 = vmatmul.mubr.bf16.gmra.mrb[0].mxu0 %v1170
      %v1225 = vpop.f32.mrb[0].mxu0
      %v1226 = vadd.f32 %v1149, %v1225
      %v1227 = vpop.f32.mrb[0].mxu0
      %v1228 = vpop.f32.mrb[0].mxu0
      %v1229 = vadd.f32 %v1149, %v1228
      %v1230 = vpop.f32.mrb[0].mxu0
      %1231 = vmatprep.mubr.bf16.mxu0 0
      %1232 = vmatmul.mubr.bf16.gmra.mrb[0].mxu0 %v1173
      %v1233 = vpop.f32.mrb[0].mxu0
      %v1234 = vadd.f32 %v1149, %v1233
      %v1235 = vpop.f32.mrb[0].mxu0
      %v1236 = vpop.f32.mrb[0].mxu0
      %v1237 = vadd.f32 %v1149, %v1236
      %v1238 = vpop.f32.mrb[0].mxu0
      %1239 = vdwg.mxu0
      %v1240 = vld [vmem:[%s679] sm:$0x1]
      %v1242 = vlaneseq
      %v1243 = vshrl.u32 %v1242, 7
      %v1244 = vsub.s32 0, %v1243
      %v1245 = vrot.slane %v1240, %v1244
      %v1247 = vmul.f32 %v1210, %v1245
      %v1248 = vmul.f32 %v1213, %v1245
      %v1249 = vmul.f32 %v1218, %v1245
      %v1250 = vmul.f32 %v1221, %v1245
      %v1251 = vmul.f32 %v1226, %v1245
      %v1252 = vmul.f32 %v1229, %v1245
      %v1253 = vmul.f32 %v1234, %v1245
      %v1254 = vmul.f32 %v1237, %v1245
      %1255 = vrot.lane.b32.xlu0 %v1245, 96
      %v1256 = vpop.permute.xlu0 %1255
      %v1258 = vadd.f32 %v1247, %v1256
      %v1259 = vadd.f32 %v1248, %v1256
      %v1260 = vadd.f32 %v1249, %v1256
      %v1261 = vadd.f32 %v1250, %v1256
      %v1262 = vadd.f32 %v1251, %v1256
      %v1263 = vadd.f32 %v1252, %v1256
      %v1264 = vadd.f32 %v1253, %v1256
      %v1265 = vadd.f32 %v1254, %v1256
      %v1266 = vld [vmem:[%s683] sm:$0xf]
      %v1267 = vld [vmem:[%s687] sm:$0xf]
      %v1268 = vpack.c.bf16 %v1259, %v1258
      %v1269 = vpack.c.bf16 %v1261, %v1260
      %v1270 = vpack.c.bf16 %v1263, %v1262
      %v1271 = vpack.c.bf16 %v1265, %v1264
      %v1272 = vld [vmem:[%s13] sm:$0xf]
      %v1273 = vld [vmem:[%s13 + $0x4] sm:$0xf]
      %v1274 = vld [vmem:[%s13 + $0x8] sm:$0xf]
      %v1275 = vld [vmem:[%s13 + $0xc] sm:$0xf]
      %v1276 = vld [vmem:[%s14] sm:$0x1]
      %v1278 = vlaneseq
      %v1279 = vshrl.u32 %v1278, 7
      %v1280 = vsub.s32 0, %v1279
      %v1281 = vrot.slane %v1276, %v1280
      %v1287 = vunpack.c.l.b16 %v1272
      %v1288 = vunpack.c.l.b16 %v1273
      %v1289 = vunpack.c.l.b16 %v1274
      %v1290 = vunpack.c.l.b16 %v1275
      %v1291 = vpack.c.b16 %v1288, %v1287
      %v1292 = vpack.c.b16 %v1290, %v1289
      %v1296 = vsel %vm849, %v1268, 0
      %v1299 = vsel %vm849, %v1269, 0
      %v1302 = vsel %vm849, %v1270, 0
      %v1305 = vsel %vm849, %v1271, 0
      %1307 = vmatprep.subr.bf16.mxu0 0
      %1308 = vmatpush1.bf16.msra.mxu0 %v1291
      %1309 = vmatprep.subr.bf16.mxu0 0
      %1310 = vmatpush1.bf16.msra.mxu0 %v1292
      %1311 = vmatprep.subr.bf16.mxu0 0
      %1312 = vmatpush1.bf16.msra.mxu0 0
      %1313 = vmatprep.subr.bf16.mxu0 0
      %1314 = vmatpush1.bf16.msra.mxu0 0
      %1315 = vmatprep.subr.bf16.mxu0 0
      %1316 = vmatpush1.bf16.msra.mxu0 0
      %1317 = vmatprep.subr.bf16.mxu0 0
      %1318 = vmatpush1.bf16.msra.mxu0 0
      %1319 = vmatprep.subr.bf16.mxu0 0
      %1320 = vmatpush1.bf16.msra.mxu0 0
      %1321 = vmatprep.subr.bf16.mxu0 0
      %1322 = vmatpush1.bf16.msra.mxu0 0
      %1323 = vmatprep.subr.bf16.mxu0 0
      %1324 = vmatpush1.bf16.msra.mxu0 0
      %1325 = vmatprep.subr.bf16.mxu0 0
      %1326 = vmatpush1.bf16.msra.mxu0 0
      %1327 = vmatprep.subr.bf16.mxu0 0
      %1328 = vmatpush1.bf16.msra.mxu0 0
      %1329 = vmatprep.subr.bf16.mxu0 0
      %1330 = vmatpush1.bf16.msra.mxu0 0
      %1331 = vmatprep.subr.bf16.mxu0 0
      %1332 = vmatpush1.bf16.msra.mxu0 0
      %1333 = vmatprep.subr.bf16.mxu0 0
      %1334 = vmatpush1.bf16.msra.mxu0 0
      %1335 = vmatprep.subr.bf16.mxu0 0
      %1336 = vmatpush1.bf16.msra.mxu0 0
      %1337 = vmatprep.subr.bf16.mxu0 0
      %1338 = vmatpush1.bf16.msra.mxu0 0
      %1339 = vmatprep.mubr.bf16.mxu0 0
      %1340 = vmatmul.mubr.bf16.gmra.mrb[0].mxu0 %v1296
      %v1341 = vpop.f32.mrb[0].mxu0
      %v1342 = vadd.f32 %v1281, %v1341
      %v1343 = vpop.f32.mrb[0].mxu0
      %v1344 = vpop.f32.mrb[0].mxu0
      %v1345 = vadd.f32 %v1281, %v1344
      %v1346 = vpop.f32.mrb[0].mxu0
      %1347 = vmatprep.mubr.bf16.mxu0 0
      %1348 = vmatmul.mubr.bf16.gmra.mrb[0].mxu0 %v1299
      %v1349 = vpop.f32.mrb[0].mxu0
      %v1350 = vadd.f32 %v1281, %v1349
      %v1351 = vpop.f32.mrb[0].mxu0
      %v1352 = vpop.f32.mrb[0].mxu0
      %v1353 = vadd.f32 %v1281, %v1352
      %v1354 = vpop.f32.mrb[0].mxu0
      %1355 = vmatprep.mubr.bf16.mxu0 0
      %1356 = vmatmul.mubr.bf16.gmra.mrb[0].mxu0 %v1302
      %v1357 = vpop.f32.mrb[0].mxu0
      %v1358 = vadd.f32 %v1281, %v1357
      %v1359 = vpop.f32.mrb[0].mxu0
      %v1360 = vpop.f32.mrb[0].mxu0
      %v1361 = vadd.f32 %v1281, %v1360
      %v1362 = vpop.f32.mrb[0].mxu0
      %1363 = vmatprep.mubr.bf16.mxu0 0
      %1364 = vmatmul.mubr.bf16.gmra.mrb[0].mxu0 %v1305
      %v1365 = vpop.f32.mrb[0].mxu0
      %v1366 = vadd.f32 %v1281, %v1365
      %v1367 = vpop.f32.mrb[0].mxu0
      %v1368 = vpop.f32.mrb[0].mxu0
      %v1369 = vadd.f32 %v1281, %v1368
      %v1370 = vpop.f32.mrb[0].mxu0
      %1371 = vdwg.mxu0
      %v1372 = vpack.c.bf16 %v1345, %v1342
      %v1373 = vpack.c.bf16 %v1353, %v1350
      %v1374 = vpack.c.bf16 %v1361, %v1358
      %v1375 = vpack.c.bf16 %v1369, %v1366
      %v1376 = vld [vmem:[%s690] sm:$0x1]
      %v1378 = vlaneseq
      %v1379 = vshrl.u32 %v1378, 7
      %v1380 = vsub.s32 0, %v1379
      %v1381 = vrot.slane %v1376, %v1380
      %v1384 = vsel %vm849, %v1372, 0
      %v1387 = vsel %vm849, %v1373, 0
      %v1390 = vsel %vm849, %v1374, 0
      %v1393 = vsel %vm849, %v1375, 0
      %v1396 = vsel %vm849, %v1266, 0
      %1398 = vmatprep.subr.bf16.mxu0 0
      %1399 = vmatpush1.bf16.xpose.msra.mxu0 %v1396
      %1400 = vmatprep.subr.bf16.mxu0 0
      %1401 = vmatpush1.bf16.xpose.msra.mxu0 0
      %1402 = vmatprep.subr.bf16.mxu0 0
      %1403 = vmatpush1.bf16.xpose.msra.mxu0 0
      %1404 = vmatprep.subr.bf16.mxu0 0
      %1405 = vmatpush1.bf16.xpose.msra.mxu0 0
      %1406 = vmatprep.subr.bf16.mxu0 0
      %1407 = vmatpush1.bf16.xpose.msra.mxu0 0
      %1408 = vmatprep.subr.bf16.mxu0 0
      %1409 = vmatpush1.bf16.xpose.msra.mxu0 0
      %1410 = vmatprep.subr.bf16.mxu0 0
      %1411 = vmatpush1.bf16.xpose.msra.mxu0 0
      %1412 = vmatprep.subr.bf16.mxu0 0
      %1413 = vmatpush1.bf16.xpose.msra.mxu0 0
      %1414 = vmatprep.subr.bf16.mxu0 0
      %1415 = vmatpush1.bf16.xpose.msra.mxu0 0
      %1416 = vmatprep.subr.bf16.mxu0 0
      %1417 = vmatpush1.bf16.xpose.msra.mxu0 0
      %1418 = vmatprep.subr.bf16.mxu0 0
      %1419 = vmatpush1.bf16.xpose.msra.mxu0 0
      %1420 = vmatprep.subr.bf16.mxu0 0
      %1421 = vmatpush1.bf16.xpose.msra.mxu0 0
      %1422 = vmatprep.subr.bf16.mxu0 0
      %1423 = vmatpush1.bf16.xpose.msra.mxu0 0
      %1424 = vmatprep.subr.bf16.mxu0 0
      %1425 = vmatpush1.bf16.xpose.msra.mxu0 0
      %1426 = vmatprep.subr.bf16.mxu0 0
      %1427 = vmatpush1.bf16.xpose.msra.mxu0 0
      %1428 = vmatprep.subr.bf16.mxu0 0
      %1429 = vmatpush1.bf16.xpose.msra.mxu0 0
      %1430 = vmatprep.mubr.bf16.mxu0 0
      %1431 = vmatmul.mubr.bf16.gmra.mrb[0].mxu0 %v1384
      %v1432 = vpop.f32.mrb[0].mxu0
      %v1433 = vadd.f32 %v1381, %v1432
      %v1434 = vpop.f32.mrb[0].mxu0
      %v1435 = vpop.f32.mrb[0].mxu0
      %v1436 = vadd.f32 %v1381, %v1435
      %v1437 = vpop.f32.mrb[0].mxu0
      %1438 = vmatprep.mubr.bf16.mxu0 0
      %1439 = vmatmul.mubr.bf16.gmra.mrb[0].mxu0 %v1387
      %v1440 = vpop.f32.mrb[0].mxu0
      %v1441 = vadd.f32 %v1381, %v1440
      %v1442 = vpop.f32.mrb[0].mxu0
      %v1443 = vpop.f32.mrb[0].mxu0
      %v1444 = vadd.f32 %v1381, %v1443
      %v1445 = vpop.f32.mrb[0].mxu0
      %1446 = vmatprep.mubr.bf16.mxu0 0
      %1447 = vmatmul.mubr.bf16.gmra.mrb[0].mxu0 %v1390
      %v1448 = vpop.f32.mrb[0].mxu0
      %v1449 = vadd.f32 %v1381, %v1448
      %v1450 = vpop.f32.mrb[0].mxu0
      %v1451 = vpop.f32.mrb[0].mxu0
      %v1452 = vadd.f32 %v1381, %v1451
      %v1453 = vpop.f32.mrb[0].mxu0
      %1454 = vmatprep.mubr.bf16.mxu0 0
      %1455 = vmatmul.mubr.bf16.gmra.mrb[0].mxu0 %v1393
      %v1456 = vpop.f32.mrb[0].mxu0
      %v1457 = vadd.f32 %v1381, %v1456
      %v1458 = vpop.f32.mrb[0].mxu0
      %v1459 = vpop.f32.mrb[0].mxu0
      %v1460 = vadd.f32 %v1381, %v1459
      %v1461 = vpop.f32.mrb[0].mxu0
      %1462 = vdwg.mxu0
      %vm1463 = vcmask 64512
      %v1464 = vsel %vm1463, %v1433, -inf
      %1465 = vmax.xlane.f32.xlu0 %v1464
      %v1466 = vpop.xlane.xlu0 %1465
      %v1467 = vsel %vm1463, %v1436, -inf
      %1468 = vmax.xlane.f32.xlu0 %v1467
      %v1469 = vpop.xlane.xlu0 %1468
      %v1470 = vsel %vm1463, %v1441, -inf
      %1471 = vmax.xlane.f32.xlu0 %v1470
      %v1472 = vpop.xlane.xlu0 %1471
      %v1473 = vsel %vm1463, %v1444, -inf
      %1474 = vmax.xlane.f32.xlu0 %v1473
      %v1475 = vpop.xlane.xlu0 %1474
      %v1476 = vsel %vm1463, %v1449, -inf
      %1477 = vmax.xlane.f32.xlu0 %v1476
      %v1478 = vpop.xlane.xlu0 %1477
      %v1479 = vsel %vm1463, %v1452, -inf
      %1480 = vmax.xlane.f32.xlu0 %v1479
      %v1481 = vpop.xlane.xlu0 %1480
      %v1482 = vsel %vm1463, %v1457, -inf
      %1483 = vmax.xlane.f32.xlu0 %v1482
      %v1484 = vpop.xlane.xlu0 %1483
      %v1485 = vsel %vm1463, %v1460, -inf
      %1486 = vmax.xlane.f32.xlu0 %v1485
      %v1487 = vpop.xlane.xlu0 %1486
      %v1488 = vsub.f32 %v1433, %v1466
      %v1489 = vsub.f32 %v1436, %v1469
      %v1490 = vsub.f32 %v1441, %v1472
      %v1491 = vsub.f32 %v1444, %v1475
      %v1492 = vsub.f32 %v1449, %v1478
      %v1493 = vsub.f32 %v1452, %v1481
      %v1494 = vsub.f32 %v1457, %v1484
      %v1495 = vsub.f32 %v1460, %v1487
      %v1496 = vmul.f32 %v1488, 1.442695
      %v1497 = vpow.pop %v1496
      %v1498 = vmul.f32 %v1489, 1.442695
      %v1499 = vpow.pop %v1498
      %v1500 = vmul.f32 %v1490, 1.442695
      %v1501 = vpow.pop %v1500
      %v1502 = vmul.f32 %v1491, 1.442695
      %v1503 = vpow.pop %v1502
      %v1504 = vmul.f32 %v1492, 1.442695
      %v1505 = vpow.pop %v1504
      %v1506 = vmul.f32 %v1493, 1.442695
      %v1507 = vpow.pop %v1506
      %v1508 = vmul.f32 %v1494, 1.442695
      %v1509 = vpow.pop %v1508
      %v1510 = vmul.f32 %v1495, 1.442695
      %v1511 = vpow.pop %v1510
      %v1512 = vsel %vm1463, %v1497, 0.0
      %1513 = vadd.xlane.f32.xlu0 %v1512
      %v1514 = vpop.xlane.xlu0 %1513
      %v1515 = vsel %vm1463, %v1499, 0.0
      %1516 = vadd.xlane.f32.xlu0 %v1515
      %v1517 = vpop.xlane.xlu0 %1516
      %v1518 = vsel %vm1463, %v1501, 0.0
      %1519 = vadd.xlane.f32.xlu0 %v1518
      %v1520 = vpop.xlane.xlu0 %1519
      %v1521 = vsel %vm1463, %v1503, 0.0
      %1522 = vadd.xlane.f32.xlu0 %v1521
      %v1523 = vpop.xlane.xlu0 %1522
      %v1524 = vsel %vm1463, %v1505, 0.0
      %1525 = vadd.xlane.f32.xlu0 %v1524
      %v1526 = vpop.xlane.xlu0 %1525
      %v1527 = vsel %vm1463, %v1507, 0.0
      %1528 = vadd.xlane.f32.xlu0 %v1527
      %v1529 = vpop.xlane.xlu0 %1528
      %v1530 = vsel %vm1463, %v1509, 0.0
      %1531 = vadd.xlane.f32.xlu0 %v1530
      %v1532 = vpop.xlane.xlu0 %1531
      %v1533 = vsel %vm1463, %v1511, 0.0
      %1534 = vadd.xlane.f32.xlu0 %v1533
      %v1535 = vpop.xlane.xlu0 %1534
      %v1536 = vrcp.pop %v1514
      %v1537 = vrcp.pop %v1517
      %v1538 = vrcp.pop %v1520
      %v1539 = vrcp.pop %v1523
      %v1540 = vrcp.pop %v1526
      %v1541 = vrcp.pop %v1529
      %v1542 = vrcp.pop %v1532
      %v1543 = vrcp.pop %v1535
      %v1544 = vmul.f32 %v1497, %v1536
      %v1545 = vmul.f32 %v1499, %v1537
      %v1546 = vmul.f32 %v1501, %v1538
      %v1547 = vmul.f32 %v1503, %v1539
      %v1548 = vmul.f32 %v1505, %v1540
      %v1549 = vmul.f32 %v1507, %v1541
      %v1550 = vmul.f32 %v1509, %v1542
      %v1551 = vmul.f32 %v1511, %v1543
      %v1552 = vpack.c.bf16 %v1545, %v1544
      %v1553 = vpack.c.bf16 %v1547, %v1546
      %v1554 = vpack.c.bf16 %v1549, %v1548
      %v1555 = vpack.c.bf16 %v1551, %v1550
      %v1557 = vsel %vm1463, %v1552, 0
      %v1560 = vsel %vm1463, %v1553, 0
      %v1563 = vsel %vm1463, %v1554, 0
      %v1566 = vsel %vm1463, %v1555, 0
      %vm1568 = vcmask 1043456
      %v1570 = vsel %vm1568, %v1267, 0
      %1572 = vmatprep.subr.bf16.mxu0 0
      %1573 = vmatpush1.bf16.msra.mxu0 %v1570
      %1574 = vmatprep.subr.bf16.mxu0 0
      %1575 = vmatpush1.bf16.msra.mxu0 0
      %1576 = vmatprep.subr.bf16.mxu0 0
      %1577 = vmatpush1.bf16.msra.mxu0 0
      %1578 = vmatprep.subr.bf16.mxu0 0
      %1579 = vmatpush1.bf16.msra.mxu0 0
      %1580 = vmatprep.subr.bf16.mxu0 0
      %1581 = vmatpush1.bf16.msra.mxu0 0
      %1582 = vmatprep.subr.bf16.mxu0 0
      %1583 = vmatpush1.bf16.msra.mxu0 0
      %1584 = vmatprep.subr.bf16.mxu0 0
      %1585 = vmatpush1.bf16.msra.mxu0 0
      %1586 = vmatprep.subr.bf16.mxu0 0
      %1587 = vmatpush1.bf16.msra.mxu0 0
      %1588 = vmatprep.subr.bf16.mxu0 0
      %1589 = vmatpush1.bf16.msra.mxu0 0
      %1590 = vmatprep.subr.bf16.mxu0 0
      %1591 = vmatpush1.bf16.msra.mxu0 0
      %1592 = vmatprep.subr.bf16.mxu0 0
      %1593 = vmatpush1.bf16.msra.mxu0 0
      %1594 = vmatprep.subr.bf16.mxu0 0
      %1595 = vmatpush1.bf16.msra.mxu0 0
      %1596 = vmatprep.subr.bf16.mxu0 0
      %1597 = vmatpush1.bf16.msra.mxu0 0
      %1598 = vmatprep.subr.bf16.mxu0 0
      %1599 = vmatpush1.bf16.msra.mxu0 0
      %1600 = vmatprep.subr.bf16.mxu0 0
      %1601 = vmatpush1.bf16.msra.mxu0 0
      %1602 = vmatprep.subr.bf16.mxu0 0
      %1603 = vmatpush1.bf16.msra.mxu0 0
      %1604 = vmatprep.mubr.bf16.mxu0 0
      %1605 = vmatmul.mubr.bf16.gmra.mrb[0].mxu0 %v1557
      %v1606 = vpop.f32.mrb[0].mxu0
      %v1607 = vadd.f32 0.0, %v1606
      %v1608 = vpop.f32.mrb[0].mxu0
      %v1609 = vpop.f32.mrb[0].mxu0
      %v1610 = vadd.f32 0.0, %v1609
      %v1611 = vpop.f32.mrb[0].mxu0
      %1612 = vmatprep.mubr.bf16.mxu0 0
      %1613 = vmatmul.mubr.bf16.gmra.mrb[0].mxu0 %v1560
      %v1614 = vpop.f32.mrb[0].mxu0
      %v1615 = vadd.f32 0.0, %v1614
      %v1616 = vpop.f32.mrb[0].mxu0
      %v1617 = vpop.f32.mrb[0].mxu0
      %v1618 = vadd.f32 0.0, %v1617
      %v1619 = vpop.f32.mrb[0].mxu0
      %1620 = vmatprep.mubr.bf16.mxu0 0
      %1621 = vmatmul.mubr.bf16.gmra.mrb[0].mxu0 %v1563
      %v1622 = vpop.f32.mrb[0].mxu0
      %v1623 = vadd.f32 0.0, %v1622
      %v1624 = vpop.f32.mrb[0].mxu0
      %v1625 = vpop.f32.mrb[0].mxu0
      %v1626 = vadd.f32 0.0, %v1625
      %v1627 = vpop.f32.mrb[0].mxu0
      %1628 = vmatprep.mubr.bf16.mxu0 0
      %1629 = vmatmul.mubr.bf16.gmra.mrb[0].mxu0 %v1566
      %v1630 = vpop.f32.mrb[0].mxu0
      %v1631 = vadd.f32 0.0, %v1630
      %v1632 = vpop.f32.mrb[0].mxu0
      %v1633 = vpop.f32.mrb[0].mxu0
      %v1634 = vadd.f32 0.0, %v1633
      %v1635 = vpop.f32.mrb[0].mxu0
      %1636 = vdwg.mxu0
      %v1637 = vadd.f32 %v1258, %v1607
      %v1638 = vadd.f32 %v1259, %v1610
      %v1639 = vadd.f32 %v1260, %v1615
      %v1640 = vadd.f32 %v1261, %v1618
      %v1641 = vadd.f32 %v1262, %v1623
      %v1642 = vadd.f32 %v1263, %v1626
      %v1643 = vadd.f32 %v1264, %v1631
      %v1644 = vadd.f32 %v1265, %v1634
      %v1645 = vpack.c.bf16 %v1638, %v1637
      %v1646 = vpack.c.bf16 %v1640, %v1639
      %v1647 = vpack.c.bf16 %v1642, %v1641
      %v1648 = vpack.c.bf16 %v1644, %v1643
      %v1649 = vld [vmem:[%s15] sm:$0xf]
      %v1650 = vld [vmem:[%s15 + $0x4] sm:$0xf]
      %v1651 = vld [vmem:[%s15 + $0x8] sm:$0xf]
      %v1652 = vld [vmem:[%s15 + $0xc] sm:$0xf]
      %v1653 = vld [vmem:[%s16] sm:$0x1]
      %v1655 = vlaneseq
      %v1656 = vshrl.u32 %v1655, 7
      %v1657 = vsub.s32 0, %v1656
      %v1658 = vrot.slane %v1653, %v1657
      %v1664 = vunpack.c.l.b16 %v1649
      %v1665 = vunpack.c.l.b16 %v1650
      %v1666 = vunpack.c.l.b16 %v1651
      %v1667 = vunpack.c.l.b16 %v1652
      %v1668 = vpack.c.b16 %v1665, %v1664
      %v1669 = vpack.c.b16 %v1667, %v1666
      %v1673 = vsel %vm849, %v1645, 0
      %v1676 = vsel %vm849, %v1646, 0
      %v1679 = vsel %vm849, %v1647, 0
      %v1682 = vsel %vm849, %v1648, 0
      %1684 = vmatprep.subr.bf16.mxu0 0
      %1685 = vmatpush1.bf16.msra.mxu0 %v1668
      %1686 = vmatprep.subr.bf16.mxu0 0
      %1687 = vmatpush1.bf16.msra.mxu0 %v1669
      %1688 = vmatprep.subr.bf16.mxu0 0
      %1689 = vmatpush1.bf16.msra.mxu0 0
      %1690 = vmatprep.subr.bf16.mxu0 0
      %1691 = vmatpush1.bf16.msra.mxu0 0
      %1692 = vmatprep.subr.bf16.mxu0 0
      %1693 = vmatpush1.bf16.msra.mxu0 0
      %1694 = vmatprep.subr.bf16.mxu0 0
      %1695 = vmatpush1.bf16.msra.mxu0 0
      %1696 = vmatprep.subr.bf16.mxu0 0
      %1697 = vmatpush1.bf16.msra.mxu0 0
      %1698 = vmatprep.subr.bf16.mxu0 0
      %1699 = vmatpush1.bf16.msra.mxu0 0
      %1700 = vmatprep.subr.bf16.mxu0 0
      %1701 = vmatpush1.bf16.msra.mxu0 0
      %1702 = vmatprep.subr.bf16.mxu0 0
      %1703 = vmatpush1.bf16.msra.mxu0 0
      %1704 = vmatprep.subr.bf16.mxu0 0
      %1705 = vmatpush1.bf16.msra.mxu0 0
      %1706 = vmatprep.subr.bf16.mxu0 0
      %1707 = vmatpush1.bf16.msra.mxu0 0
      %1708 = vmatprep.subr.bf16.mxu0 0
      %1709 = vmatpush1.bf16.msra.mxu0 0
      %1710 = vmatprep.subr.bf16.mxu0 0
      %1711 = vmatpush1.bf16.msra.mxu0 0
      %1712 = vmatprep.subr.bf16.mxu0 0
      %1713 = vmatpush1.bf16.msra.mxu0 0
      %1714 = vmatprep.subr.bf16.mxu0 0
      %1715 = vmatpush1.bf16.msra.mxu0 0
      %1716 = vmatprep.mubr.bf16.mxu0 0
      %1717 = vmatmul.mubr.bf16.gmra.mrb[0].mxu0 %v1673
      %v1718 = vpop.f32.mrb[0].mxu0
      %v1719 = vadd.f32 %v1658, %v1718
      %v1720 = vpop.f32.mrb[0].mxu0
      %v1721 = vpop.f32.mrb[0].mxu0
      %v1722 = vadd.f32 %v1658, %v1721
      %v1723 = vpop.f32.mrb[0].mxu0
      %1724 = vmatprep.mubr.bf16.mxu0 0
      %1725 = vmatmul.mubr.bf16.gmra.mrb[0].mxu0 %v1676
      %v1726 = vpop.f32.mrb[0].mxu0
      %v1727 = vadd.f32 %v1658, %v1726
      %v1728 = vpop.f32.mrb[0].mxu0
      %v1729 = vpop.f32.mrb[0].mxu0
      %v1730 = vadd.f32 %v1658, %v1729
      %v1731 = vpop.f32.mrb[0].mxu0
      %1732 = vmatprep.mubr.bf16.mxu0 0
      %1733 = vmatmul.mubr.bf16.gmra.mrb[0].mxu0 %v1679
      %v1734 = vpop.f32.mrb[0].mxu0
      %v1735 = vadd.f32 %v1658, %v1734
      %v1736 = vpop.f32.mrb[0].mxu0
      %v1737 = vpop.f32.mrb[0].mxu0
      %v1738 = vadd.f32 %v1658, %v1737
      %v1739 = vpop.f32.mrb[0].mxu0
      %1740 = vmatprep.mubr.bf16.mxu0 0
      %1741 = vmatmul.mubr.bf16.gmra.mrb[0].mxu0 %v1682
      %v1742 = vpop.f32.mrb[0].mxu0
      %v1743 = vadd.f32 %v1658, %v1742
      %v1744 = vpop.f32.mrb[0].mxu0
      %v1745 = vpop.f32.mrb[0].mxu0
      %v1746 = vadd.f32 %v1658, %v1745
      %v1747 = vpop.f32.mrb[0].mxu0
      %1748 = vdwg.mxu0
      %v1749 = vmax.f32 %v1719, 0.0
      %v1750 = vmax.f32 %v1722, 0.0
      %v1751 = vmax.f32 %v1727, 0.0
      %v1752 = vmax.f32 %v1730, 0.0
      %v1753 = vmax.f32 %v1735, 0.0
      %v1754 = vmax.f32 %v1738, 0.0
      %v1755 = vmax.f32 %v1743, 0.0
      %v1756 = vmax.f32 %v1746, 0.0
      %v1757 = vpack.c.bf16 %v1750, %v1749
      %v1758 = vpack.c.bf16 %v1752, %v1751
      %v1759 = vpack.c.bf16 %v1754, %v1753
      %v1760 = vpack.c.bf16 %v1756, %v1755
      %v1761 = vld [vmem:[%s17] sm:$0xf]
      %v1762 = vld [vmem:[%s17 + $0x4] sm:$0xf]
      %v1763 = vld [vmem:[%s17 + $0x8] sm:$0xf]
      %v1764 = vld [vmem:[%s17 + $0xc] sm:$0xf]
      %v1765 = vld [vmem:[%s17 + $0x10] sm:$0xf]
      %v1766 = vld [vmem:[%s17 + $0x14] sm:$0xf]
      %v1767 = vld [vmem:[%s17 + $0x18] sm:$0xf]
      %v1768 = vld [vmem:[%s17 + $0x1c] sm:$0xf]
      %v1777 = vunpack.c.l.b16 %v1761
      %v1778 = vunpack.c.l.b16 %v1762
      %v1779 = vunpack.c.l.b16 %v1763
      %v1780 = vunpack.c.l.b16 %v1764
      %v1781 = vunpack.c.l.b16 %v1765
      %v1782 = vunpack.c.l.b16 %v1766
      %v1783 = vunpack.c.l.b16 %v1767
      %v1784 = vunpack.c.l.b16 %v1768
      %v1785 = vpack.c.b16 %v1778, %v1777
      %v1786 = vpack.c.b16 %v1780, %v1779
      %v1787 = vpack.c.b16 %v1782, %v1781
      %v1788 = vpack.c.b16 %v1784, %v1783
      %v1794 = vsel %vm1035, %v1757, 0
      %v1797 = vsel %vm1035, %v1758, 0
      %v1800 = vsel %vm1035, %v1759, 0
      %v1803 = vsel %vm1035, %v1760, 0
      %1805 = vmatprep.subr.bf16.mxu0 0
      %1806 = vmatpush1.bf16.msra.mxu0 %v1785
      %1807 = vmatprep.subr.bf16.mxu0 0
      %1808 = vmatpush1.bf16.msra.mxu0 %v1786
      %1809 = vmatprep.subr.bf16.mxu0 0
      %1810 = vmatpush1.bf16.msra.mxu0 %v1787
      %1811 = vmatprep.subr.bf16.mxu0 0
      %1812 = vmatpush1.bf16.msra.mxu0 %v1788
      %1813 = vmatprep.subr.bf16.mxu0 0
      %1814 = vmatpush1.bf16.msra.mxu0 0
      %1815 = vmatprep.subr.bf16.mxu0 0
      %1816 = vmatpush1.bf16.msra.mxu0 0
      %1817 = vmatprep.subr.bf16.mxu0 0
      %1818 = vmatpush1.bf16.msra.mxu0 0
      %1819 = vmatprep.subr.bf16.mxu0 0
      %1820 = vmatpush1.bf16.msra.mxu0 0
      %1821 = vmatprep.subr.bf16.mxu0 0
      %1822 = vmatpush1.bf16.msra.mxu0 0
      %1823 = vmatprep.subr.bf16.mxu0 0
      %1824 = vmatpush1.bf16.msra.mxu0 0
      %1825 = vmatprep.subr.bf16.mxu0 0
      %1826 = vmatpush1.bf16.msra.mxu0 0
      %1827 = vmatprep.subr.bf16.mxu0 0
      %1828 = vmatpush1.bf16.msra.mxu0 0
      %1829 = vmatprep.subr.bf16.mxu0 0
      %1830 = vmatpush1.bf16.msra.mxu0 0
      %1831 = vmatprep.subr.bf16.mxu0 0
      %1832 = vmatpush1.bf16.msra.mxu0 0
      %1833 = vmatprep.subr.bf16.mxu0 0
      %1834 = vmatpush1.bf16.msra.mxu0 0
      %1835 = vmatprep.subr.bf16.mxu0 0
      %1836 = vmatpush1.bf16.msra.mxu0 0
      %1837 = vmatprep.mubr.bf16.mxu0 0
      %1838 = vmatmul.mubr.bf16.gmra.mrb[0].mxu0 %v1794
      %v1839 = vpop.f32.mrb[0].mxu0
      %v1840 = vadd.f32 0.0, %v1839
      %v1841 = vpop.f32.mrb[0].mxu0
      %v1842 = vpop.f32.mrb[0].mxu0
      %v1843 = vadd.f32 0.0, %v1842
      %v1844 = vpop.f32.mrb[0].mxu0
      %1845 = vmatprep.mubr.bf16.mxu0 0
      %1846 = vmatmul.mubr.bf16.gmra.mrb[0].mxu0 %v1797
      %v1847 = vpop.f32.mrb[0].mxu0
      %v1848 = vadd.f32 0.0, %v1847
      %v1849 = vpop.f32.mrb[0].mxu0
      %v1850 = vpop.f32.mrb[0].mxu0
      %v1851 = vadd.f32 0.0, %v1850
      %v1852 = vpop.f32.mrb[0].mxu0
      %1853 = vmatprep.mubr.bf16.mxu0 0
      %1854 = vmatmul.mubr.bf16.gmra.mrb[0].mxu0 %v1800
      %v1855 = vpop.f32.mrb[0].mxu0
      %v1856 = vadd.f32 0.0, %v1855
      %v1857 = vpop.f32.mrb[0].mxu0
      %v1858 = vpop.f32.mrb[0].mxu0
      %v1859 = vadd.f32 0.0, %v1858
      %v1860 = vpop.f32.mrb[0].mxu0
      %1861 = vmatprep.mubr.bf16.mxu0 0
      %1862 = vmatmul.mubr.bf16.gmra.mrb[0].mxu0 %v1803
      %v1863 = vpop.f32.mrb[0].mxu0
      %v1864 = vadd.f32 0.0, %v1863
      %v1865 = vpop.f32.mrb[0].mxu0
      %v1866 = vpop.f32.mrb[0].mxu0
      %v1867 = vadd.f32 0.0, %v1866
      %v1868 = vpop.f32.mrb[0].mxu0
      %1869 = vdwg.mxu0
      %v1870 = vadd.f32 %v1637, %v1840
      %v1871 = vadd.f32 %v1638, %v1843
      %v1872 = vadd.f32 %v1639, %v1848
      %v1873 = vadd.f32 %v1640, %v1851
      %v1874 = vadd.f32 %v1641, %v1856
      %v1875 = vadd.f32 %v1642, %v1859
      %v1876 = vadd.f32 %v1643, %v1864
      %v1877 = vadd.f32 %v1644, %v1867
      %v1878 = vld [vmem:[%s18] sm:$0x1]
      %v1880 = vlaneseq
      %v1881 = vshrl.u32 %v1880, 7
      %v1882 = vsub.s32 0, %v1881
      %v1883 = vrot.slane %v1878, %v1882
      %v1885 = vadd.f32 %v1870, %v1883
      %v1886 = vadd.f32 %v1871, %v1883
      %v1887 = vadd.f32 %v1872, %v1883
      %v1888 = vadd.f32 %v1873, %v1883
      %v1889 = vadd.f32 %v1874, %v1883
      %v1890 = vadd.f32 %v1875, %v1883
      %v1891 = vadd.f32 %v1876, %v1883
      %v1892 = vadd.f32 %v1877, %v1883
      %v1893 = vpack.c.bf16 %v1240, %v1240
      %v1894 = vpack.c.bf16 %v1886, %v1885
      %v1895 = vpack.c.bf16 %v1888, %v1887
      %v1896 = vpack.c.bf16 %v1890, %v1889
      %v1897 = vpack.c.bf16 %v1892, %v1891
      %1898 = vset.pattern.permute.xlu0 96
      %1899 = vperm.xlu0 %1898, %v1240
      %v1900 = vpop.permute.xlu0 %1899
      %v1902 = vlaneseq
      %v1903 = vshrl.u32 %v1902, 7
      %v1904 = vsub.s32 0, %v1903
      %v1905 = vrot.slane %v1900, %v1904
      %1907 = vrot.lane.b32.xlu0 %v1893, 64
      %v1908 = vpop.permute.xlu0 %1907
      %v1910 = vsel %vm849, %v1908, 0
      %v1913 = vsel %vm849, %v1894, 0
      %v1916 = vsel %vm849, %v1895, 0
      %v1919 = vsel %vm849, %v1896, 0
      %v1922 = vsel %vm849, %v1897, 0
      %1924 = vmatprep.subr.bf16.mxu0 0
      %1925 = vmatpush1.bf16.xpose.msra.mxu0 %v1913
      %1926 = vmatprep.subr.bf16.mxu0 0
      %1927 = vmatpush1.bf16.xpose.msra.mxu0 %v1916
      %1928 = vmatprep.subr.bf16.mxu0 0
      %1929 = vmatpush1.bf16.xpose.msra.mxu0 %v1919
      %1930 = vmatprep.subr.bf16.mxu0 0
      %1931 = vmatpush1.bf16.xpose.msra.mxu0 %v1922
      %1932 = vmatprep.subr.bf16.mxu0 0
      %1933 = vmatpush1.bf16.xpose.msra.mxu0 0
      %1934 = vmatprep.subr.bf16.mxu0 0
      %1935 = vmatpush1.bf16.xpose.msra.mxu0 0
      %1936 = vmatprep.subr.bf16.mxu0 0
      %1937 = vmatpush1.bf16.xpose.msra.mxu0 0
      %1938 = vmatprep.subr.bf16.mxu0 0
      %1939 = vmatpush1.bf16.xpose.msra.mxu0 0
      %1940 = vmatprep.subr.bf16.mxu0 0
      %1941 = vmatpush1.bf16.xpose.msra.mxu0 0
      %1942 = vmatprep.subr.bf16.mxu0 0
      %1943 = vmatpush1.bf16.xpose.msra.mxu0 0
      %1944 = vmatprep.subr.bf16.mxu0 0
      %1945 = vmatpush1.bf16.xpose.msra.mxu0 0
      %1946 = vmatprep.subr.bf16.mxu0 0
      %1947 = vmatpush1.bf16.xpose.msra.mxu0 0
      %1948 = vmatprep.subr.bf16.mxu0 0
      %1949 = vmatpush1.bf16.xpose.msra.mxu0 0
      %1950 = vmatprep.subr.bf16.mxu0 0
      %1951 = vmatpush1.bf16.xpose.msra.mxu0 0
      %1952 = vmatprep.subr.bf16.mxu0 0
      %1953 = vmatpush1.bf16.xpose.msra.mxu0 0
      %1954 = vmatprep.subr.bf16.mxu0 0
      %1955 = vmatpush1.bf16.xpose.msra.mxu0 0
      %1956 = vmatprep.mubr.bf16.mxu0 0
      %1957 = vmatmul.mubr.bf16.gmra.mrb[0].mxu0 %v1910
      %v1958 = vpop.f32.mrb[0].mxu0
      %v1959 = vadd.f32 %v1905, %v1958
      %v1960 = vpop.f32.mrb[0].mxu0
      %v1961 = vpop.f32.mrb[0].mxu0
      %v1962 = vpop.f32.mrb[0].mxu0
      %1963 = vdwg.mxu0
      %vm1964 = vcmask 516096
      %1965 = vst.msk [vmem:[%s696] sm:$0x1] %vm1964, %v1959
      %p1966 = scmp.lt.s32.totalorder %s34, 1
      %s1967 = scalar_select %p1966, %s34, 1
      %p1968 = scmp.lt.s32.totalorder %s35, 0
      %s1969 = scalar_select %p1968, %s35, 0
      %s1970 = sadd.s32 %s1969, %s1967
      %s1971 = scalar_lea.vmem %s19, %s1970
      // Predicated region
      $region97: #{caris_forward.3} parent=95 // pred_check
        %p1972 = pneg %p488
      $region98: #{caris_forward.3} parent=95 // pred_check_branch
        %1974 = sbr.rel (%p1972) target = $region100
      $region99: #{caris_forward.3} parent=95 // pred_region
        _
      $region100: #{caris_forward.3} parent=95 // pred_fallthru
        _
    $region96: #{caris_forward.3} parent=5 // pred_fallthru
      _
    %p1975 = scmp.le.s32.totalorder 2, %s25
    // Predicated region
    $region101: #{caris_forward.3} parent=5 // pred_check
      %p1976 = pneg %p1975
    $region102: #{caris_forward.3} parent=5 // pred_check_branch
      %1978 = sbr.rel (%p1976) target = $region104
    $region103: #{caris_forward.3} parent=5 // pred_region
      %s1979 = ssub.s32 %s25, 2
      // Predicated region
      $region105: #{caris_forward.3} parent=103 // pred_check
        %p1980 = pneg %p494
      $region106: #{caris_forward.3} parent=103 // pred_check_branch
        %1982 = sbr.rel (%p1980) target = $region108
      $region107: #{caris_forward.3} parent=103 // pred_region
        %p1983 = scmp.lt.s32.totalorder %s36, 1
        %s1984 = scalar_select %p1983, %s36, 1
        %p1985 = scmp.lt.s32.totalorder %s37, 0
        %s1986 = scalar_select %p1985, %s37, 0
        %s1987 = sadd.s32 %s1986, %s1984
        %s1988 = scalar_lea.vmem %s19, %s1987
      $region108: #{caris_forward.3} parent=103 // pred_fallthru
        _
    $region104: #{caris_forward.3} parent=5 // pred_fallthru
      _
  $region6: #{caris_forward.3} parent=0 // loop_footer
    %s29 = sadd.s32 1, %s25
  $region7: #{caris_forward.3} parent=0 // loop_footer_branch
    %24 = sbr.rel target = $region3
  $region8: #{caris_forward.3} parent=0 // loop_exit
    _

</llo_original>
